<compile_context>
chip_gen: v7x
topology: tpu7x:2x2x1
jax: 0.10.0
libtpu: 0.0.40
codegen_flags: <defaults>
</compile_context>

<pallas_src>
import numpy as np
import jax
import jax.numpy as jnp
from jax.experimental import pallas as pl
from jax.experimental.pallas import tpu as pltpu

# ------------------------- configuration (mirrors module __init__) ------------
IN_CH = 4
OUT_CH = 8
EMB_DIM = 32
H = W = 16
N = 2
GROUPS = min(IN_CH // 4, 32)     # PyTorch code uses min(in_ch // 4, 32) for BOTH norms
EPS = 1e-6
INV_SQRT2 = 1.0 / np.sqrt(2.0)
assert GROUPS == 1, "kernel implements the groups=1 case produced by this config"

# MXU operand dtype.  float32 keeps the strict 1e-4 check against the f32 reference.
# On v6e/v7x, jnp.bfloat16 gives ~2x MXU throughput and halves weight bytes (GN stats,
# rsqrt, biases and accumulation stay f32 either way), at ~1e-2 tolerance.
MXU_DTYPE = jnp.float32


# --------------------------------- kernel -------------------------------------
def resnet_block_kernel(x_ref, emb_ref, w_ref, p_ref, out_ref):
    """One grid step == one sample (GroupNorm groups=1 -> per-sample stats).

    x_ref   : (1, H, 2*W*Cin)  lane-dense packed input, duplicated [x | x]
    emb_ref : (1, 1, E)        conditioning embedding for this sample
    w_ref   : (3, 2*W*Cin + W*Cout, 2*W*Cout) stacked banded weights; per tap dy:
                rows [0, 2*W*Cin)            -> block-diag(conv1 band, skip band)
                rows [2*W*Cin, +W*Cout), cols [0, W*Cout) -> conv2 band
    p_ref   : (8 + E, W*Cout)  rows 0/1: gn1 gamma/beta (upper lanes zero),
                               row 2: emb bias + conv1 bias, rows 3/4: gn2 gamma/beta,
                               row 5: conv2 bias + skip bias, rows 8..: emb Linear weight
    out_ref : (1, H, W*Cout)
    """
    f32 = jnp.float32
    xdup = x_ref[0].astype(f32)                  # (H, 2*W*Cin) = [x | x]
    hh, kf = xdup.shape                          # kf = 2*W*Cin (fused matmul K)
    wci = kf // 2                                # W*Cin
    wco = out_ref.shape[-1]                      # W*Cout
    emb_dim = emb_ref.shape[-1]

    def gn_silu(a, gamma, beta):
        # GroupNorm(num_groups=1, eps=1e-6) + affine + SiLU, one-pass stats (clamped).
        cnt = a.shape[0] * a.shape[1]
        s1 = jnp.sum(jnp.sum(a, axis=1, keepdims=True), axis=0, keepdims=True)
        s2 = jnp.sum(jnp.sum(a * a, axis=1, keepdims=True), axis=0, keepdims=True)
        mean = s1 * (1.0 / cnt)
        var = jnp.maximum(s2 * (1.0 / cnt) - mean * mean, 0.0)
        an = (a - mean) * jax.lax.rsqrt(var + EPS)
        an = an * gamma + beta
        return an * jax.nn.sigmoid(an)           # SiLU

    def conv3x3(lhs, row_lo, row_hi, n_cols):
        # 3x3 SAME conv = 3 lane-dense matmuls (one per vertical tap).  Horizontal taps
        # + channel mixing are folded in the banded weights; the vertical taps and the
        # zero H-padding are input rolls (XLU) + iota border masks (VPU) -- no shift
        # matmuls, no padded scratch.
        ri = jax.lax.broadcasted_iota(jnp.int32, lhs.shape, 0)
        from_above = jnp.where(ri == 0, 0.0, pltpu.roll(lhs, shift=1, axis=0))
        from_below = jnp.where(ri == hh - 1, 0.0, pltpu.roll(lhs, shift=hh - 1, axis=0))

        def tap(a, dy):
            wt = w_ref[dy, row_lo:row_hi, 0:n_cols]
            return jnp.dot(a.astype(wt.dtype), wt, preferred_element_type=f32)

        return tap(from_above, 0) + tap(lhs, 1) + tap(from_below, 2)

    # packed per-channel params (tiled across W so they broadcast lane-dense)
    g1 = p_ref[0:1, :]                           # gn1 gamma (lanes >= W*Cin are zero)
    be1 = p_ref[1:2, :]                          # gn1 beta
    eb = p_ref[2:3, :]                           # emb-Linear bias + conv1 bias
    g2 = p_ref[3:4, :]                           # gn2 gamma
    be2 = p_ref[4:5, :]                          # gn2 beta
    bf = p_ref[5:6, :]                           # conv2 bias + skip-conv bias
    lw = p_ref[8:8 + emb_dim, :]                 # emb Linear weight, width-tiled (E, W*Cout)

    # ---- in_layers: GroupNorm -> SiLU on the duplicated input (same stats as x),
    #      then lane-mask the upper half back to raw x -> fused LHS [gn_silu(x) | x]
    gact = gn_silu(xdup, g1, be1)
    lane = jax.lax.broadcasted_iota(jnp.int32, xdup.shape, 1)
    lhs1 = jnp.where(lane < wci, gact, xdup)     # (H, 2*W*Cin)

    # ---- fused conv1 + skip conv: one K=2*W*Cin, N=2*W*Cout matmul per vertical tap
    fused = conv3x3(lhs1, 0, kf, 2 * wco)        # (H, 2*W*Cout)
    h = fused[:, 0:wco]                          # conv1(gn_silu(x))
    skip = fused[:, wco:2 * wco]                 # skip_conv(x)

    # ---- emb_layers: SiLU -> Linear (bias also carries conv1's bias) ----
    e = emb_ref[0].astype(f32)                   # (1, E)
    e = e * jax.nn.sigmoid(e)
    eo = jnp.dot(e, lw, preferred_element_type=f32) + eb     # (1, W*Cout)

    h = h + eo                                   # broadcast emb over the H rows

    # ---- out_layers: GroupNorm -> SiLU -> Dropout(p=0, identity) -> Conv3x3 ----
    h = gn_silu(h, g2, be2)
    h = conv3x3(h, kf, kf + wco, wco)            # (H, W*Cout)

    out = (h + skip + bf) * INV_SQRT2            # scale_by_sqrt2
    out_ref[0] = out.astype(out_ref.dtype)


# --------------------------- one-time weight prep ------------------------------
def _band_weights(w, width):
    """HWIO (3,3,Cin,Cout) conv weight -> (3, width*Cin, width*Cout) banded matrices
    folding horizontal taps + channel mixing (one matrix per vertical tap)."""
    kh, kw, cin, cout = w.shape
    mats = []
    for dy in range(kh):
        acc = jnp.zeros((width * cin, width * cout), w.dtype)
        for dx in range(kw):
            acc = acc + jnp.kron(jnp.eye(width, k=1 - dx, dtype=w.dtype), w[dy, dx])
        mats.append(acc)
    return jnp.stack(mats)


def prepare_params(p, ww):
    """Weight / layout prep.  Run ONCE outside the per-call forward (the kron work is
    not constant-folded inside jit, so it must not be redone every step)."""
    cin, cout = p["w1"].shape[2], p["w1"].shape[3]
    wci, wco = ww * cin, ww * cout
    kf = 2 * wci
    assert wci <= wco, "param-slab layout assumes W*Cin <= W*Cout for this config"

    w1b = _band_weights(p["w1"], ww)             # (3, wci, wco)
    wsb = _band_weights(p["ws"], ww)             # (3, wci, wco)
    w2b = _band_weights(p["w2"], ww)             # (3, wco, wco)

    # Stacked weight tensor: per tap dy, rows [0, kf) = block-diag(w1b, wsb) (the fused
    # conv1+skip RHS, K=kf, N=2*wco); rows [kf, kf+wco), cols [0, wco) = conv2 RHS.
    wbig = jnp.zeros((3, kf + wco, 2 * wco), jnp.float32)
    wbig = wbig.at[:, 0:wci, 0:wco].set(w1b)
    wbig = wbig.at[:, wci:kf, wco:2 * wco].set(wsb)
    wbig = wbig.at[:, kf:kf + wco, 0:wco].set(w2b)
    wbig = wbig.astype(MXU_DTYPE)

    def tile_w(v):                               # (1, C) -> (1, W*C), channel-fastest
        return jnp.tile(jnp.asarray(v).reshape(1, -1), (1, ww))

    def pad_to(row, n):
        return jnp.pad(row, ((0, 0), (0, n - row.shape[1])))

    pslab = jnp.concatenate([
        pad_to(tile_w(p["gn1_s"]), wco),         # row 0: gn1 gamma
        pad_to(tile_w(p["gn1_b"]), wco),         # row 1: gn1 beta
        tile_w(p["lb"] + p["b1"]),               # row 2: emb bias + conv1 bias
        tile_w(p["gn2_s"]),                      # row 3: gn2 gamma
        tile_w(p["gn2_b"]),                      # row 4: gn2 beta
        tile_w(p["b2"] + p["bs"]),               # row 5: conv2 bias + skip bias
        jnp.zeros((2, wco), jnp.float32),        # rows 6-7: pad so lw starts 8-aligned
        jnp.tile(p["lw"], (1, ww)),              # rows 8..: emb Linear weight (E, wco)
    ], axis=0).astype(jnp.float32)

    return {"wbig": wbig, "pslab": pslab}


# ------------------------------- wrapper ---------------------------------------
@jax.jit
def resnet_block_biggan(x, emb, prep):
    """x: (N, H, W, Cin) NHWC, emb: (N, E), prep: prepare_params(...).
    Returns (N, H, W, Cout)."""
    n, hh, ww, cin = x.shape
    emb_dim = emb.shape[-1]
    wbig, pslab = prep["wbig"], prep["pslab"]
    wco = wbig.shape[-1] // 2
    cout = wco // ww
    wci = ww * cin
    kf = 2 * wci

    x2 = x.reshape(n, hh, wci)                   # lane-dense packed input (free reshape)
    x2dup = jnp.concatenate([x2, x2], axis=-1)   # [x | x]: kernel builds the fused conv
                                                 # LHS with a lane mask (no in-kernel concat)
    emb3 = emb.reshape(n, 1, emb_dim)

    # advisory cost hint so XLA schedules the surrounding ops around the custom call
    flops = n * (3 * 2 * hh * kf * 2 * wco + 3 * 2 * hh * wco * wco + 2 * emb_dim * wco)
    transcendentals = n * (hh * kf + hh * wco + emb_dim)
    bytes_accessed = (4 * (x2dup.size + emb3.size + pslab.size + n * hh * wco)
                      + wbig.size * jnp.dtype(wbig.dtype).itemsize)

    out2 = pl.pallas_call(
        resnet_block_kernel,
        out_shape=jax.ShapeDtypeStruct((n, hh, wco), x.dtype),
        grid_spec=pltpu.PrefetchScalarGridSpec(
            num_scalar_prefetch=0,
            grid=(n,),                           # one sample per grid step
            in_specs=[
                pl.BlockSpec((1, hh, kf), lambda i: (i, 0, 0)),        # x (per sample)
                pl.BlockSpec((1, 1, emb_dim), lambda i: (i, 0, 0)),    # emb (per sample)
                pl.BlockSpec(wbig.shape, lambda i: (0, 0, 0)),         # weights (resident)
                pl.BlockSpec(pslab.shape, lambda i: (0, 0)),           # params (resident)
            ],
            out_specs=pl.BlockSpec((1, hh, wco), lambda i: (i, 0, 0)),
        ),
        compiler_params=pltpu.CompilerParams(
            dimension_semantics=("parallel",),   # v7x: samples split across TensorCores
            vmem_limit_bytes=32 * 1024 * 1024,
        ),
        cost_estimate=pl.CostEstimate(
            flops=flops, transcendentals=transcendentals, bytes_accessed=bytes_accessed),
    )(x2dup, emb3, wbig, pslab)

    return out2.reshape(n, hh, ww, cout)         # free reshape back to NHWC


# ----------------------------- pure-JAX reference ------------------------------
def reference(x, emb, p):
    def gn(h, gamma, beta, g, eps=EPS):
        n_, hh, ww, c = h.shape
        hg = h.reshape(n_, hh, ww, g, c // g)
        mean = hg.mean(axis=(1, 2, 4), keepdims=True)
        var = ((hg - mean) ** 2).mean(axis=(1, 2, 4), keepdims=True)
        hn = ((hg - mean) / jnp.sqrt(var + eps)).reshape(n_, hh, ww, c)
        return hn * gamma.reshape(1, 1, 1, c) + beta.reshape(1, 1, 1, c)

    def conv(h, w, b):
        y = jax.lax.conv_general_dilated(
            h, w, window_strides=(1, 1), padding="SAME",
            dimension_numbers=("NHWC", "HWIO", "NHWC"))
        return y + b.reshape(1, 1, 1, -1)

    silu = jax.nn.silu
    h = conv(silu(gn(x, p["gn1_s"], p["gn1_b"], GROUPS)), p["w1"], p["b1"])
    e = silu(emb) @ p["lw"] + p["lb"]                      # (N, Cout)
    h = h + e[:, None, None, :]
    h = conv(silu(gn(h, p["gn2_s"], p["gn2_b"], GROUPS)), p["w2"], p["b2"])
    skip = conv(x, p["ws"], p["bs"])
    return (skip + h) * INV_SQRT2


# ----------------------------------- main ---------------------------------------
if __name__ == "__main__":
    key = jax.random.PRNGKey(0)
    ks = jax.random.split(key, 16)
    f32 = jnp.float32

    x = jax.random.normal(ks[0], (N, H, W, IN_CH), f32)     # NHWC (PyTorch NCHW transposed)
    emb = jax.random.normal(ks[1], (N, EMB_DIM), f32)

    params = {
        "gn1_s": 1.0 + 0.1 * jax.random.normal(ks[2], (1, IN_CH), f32),
        "gn1_b": 0.1 * jax.random.normal(ks[3], (1, IN_CH), f32),
        "w1": 0.1 * jax.random.normal(ks[4], (3, 3, IN_CH, OUT_CH), f32),
        "b1": 0.1 * jax.random.normal(ks[5], (1, OUT_CH), f32),
        "lw": 0.1 * jax.random.normal(ks[6], (EMB_DIM, OUT_CH), f32),
        "lb": 0.1 * jax.random.normal(ks[7], (1, OUT_CH), f32),
        "gn2_s": 1.0 + 0.1 * jax.random.normal(ks[8], (1, OUT_CH), f32),
        "gn2_b": 0.1 * jax.random.normal(ks[9], (1, OUT_CH), f32),
        # NOTE: the PyTorch module zeroes out_layers' conv params at init (zero_module);
        # deterministic non-zero values are used here so the out-branch is numerically
        # exercised — the forward computation graph is identical.
        "w2": 0.1 * jax.random.normal(ks[10], (3, 3, OUT_CH, OUT_CH), f32),
        "b2": 0.1 * jax.random.normal(ks[11], (1, OUT_CH), f32),
        "ws": 0.1 * jax.random.normal(ks[12], (3, 3, IN_CH, OUT_CH), f32),
        "bs": 0.1 * jax.random.normal(ks[13], (1, OUT_CH), f32),
    }

    prep = prepare_params(params, W)             # one-time weight/layout prep (not per-call)
    out = jax.block_until_ready(resnet_block_biggan(x, emb, prep))
    ref = jax.block_until_ready(reference(x, emb, params))
    np.testing.assert_allclose(np.asarray(out), np.asarray(ref), rtol=1e-4, atol=1e-4)
    print("KERNEL_OK")
</pallas_src>

<mosaic_0001>
module attributes {stable_mosaic.version = 11 : i64} {
  func.func @resnet_block_kernel(%arg0: i32, %arg1: memref<1x16x128xf32, #tpu.memory_space<vmem>>, %arg2: memref<1x1x32xf32, #tpu.memory_space<vmem>>, %arg3: memref<3x256x256xf32, #tpu.memory_space<vmem>>, %arg4: memref<40x128xf32, #tpu.memory_space<vmem>>, %arg5: memref<1x16x128xf32, #tpu.memory_space<vmem>>) attributes {dimension_semantics = [#tpu.dimension_semantics<parallel>], iteration_bounds = array<i64: 2>, scalar_prefetch = 0 : i64, scratch_operands = 0 : i64, tpu.core_type = #tpu.core_type<tc>, window_params = [{transform_indices = @transform_0, window_bounds = array<i64: 1, 16, 128>}, {transform_indices = @transform_1, window_bounds = array<i64: 1, 1, 32>}, {pipeline_mode = #tpu.pipeline_mode<synchronous>, transform_indices = @transform_2, window_bounds = array<i64: 3, 256, 256>}, {pipeline_mode = #tpu.pipeline_mode<synchronous>, transform_indices = @transform_3, window_bounds = array<i64: 40, 128>}, {transform_indices = @transform_4, window_bounds = array<i64: 1, 16, 128>}]} {
    %c0 = arith.constant 0 : index
    %c0_0 = arith.constant 0 : index
    %c0_1 = arith.constant 0 : index
    %0 = vector.load %arg1[%c0, %c0_0, %c0_1] : memref<1x16x128xf32, #tpu.memory_space<vmem>>, vector<1x16x128xf32>
    %1 = vector.shape_cast %0 : vector<1x16x128xf32> to vector<16x128xf32>
    %c0_2 = arith.constant 0 : index
    %c0_3 = arith.constant 0 : index
    %2 = vector.load %arg4[%c0_2, %c0_3] : memref<40x128xf32, #tpu.memory_space<vmem>>, vector<1x128xf32>
    %c1 = arith.constant 1 : index
    %c0_4 = arith.constant 0 : index
    %3 = vector.load %arg4[%c1, %c0_4] : memref<40x128xf32, #tpu.memory_space<vmem>>, vector<1x128xf32>
    %c2 = arith.constant 2 : index
    %c0_5 = arith.constant 0 : index
    %4 = vector.load %arg4[%c2, %c0_5] : memref<40x128xf32, #tpu.memory_space<vmem>>, vector<1x128xf32>
    %c3 = arith.constant 3 : index
    %c0_6 = arith.constant 0 : index
    %5 = vector.load %arg4[%c3, %c0_6] : memref<40x128xf32, #tpu.memory_space<vmem>>, vector<1x128xf32>
    %c4 = arith.constant 4 : index
    %c0_7 = arith.constant 0 : index
    %6 = vector.load %arg4[%c4, %c0_7] : memref<40x128xf32, #tpu.memory_space<vmem>>, vector<1x128xf32>
    %c5 = arith.constant 5 : index
    %c0_8 = arith.constant 0 : index
    %7 = vector.load %arg4[%c5, %c0_8] : memref<40x128xf32, #tpu.memory_space<vmem>>, vector<1x128xf32>
    %c8 = arith.constant 8 : index
    %c0_9 = arith.constant 0 : index
    %8 = vector.load %arg4[%c8, %c0_9] : memref<40x128xf32, #tpu.memory_space<vmem>>, vector<32x128xf32>
    %cst = arith.constant dense<0.000000e+00> : vector<16xf32>
    %9 = vector.multi_reduction <add>, %1, %cst [1] : vector<16x128xf32> to vector<16xf32>
    %10 = vector.shape_cast %9 : vector<16xf32> to vector<16x1xf32>
    %cst_10 = arith.constant dense<0.000000e+00> : vector<1xf32>
    %11 = vector.multi_reduction <add>, %10, %cst_10 [0] : vector<16x1xf32> to vector<1xf32>
    %12 = vector.shape_cast %11 : vector<1xf32> to vector<1x1xf32>
    %13 = arith.mulf %1, %1 : vector<16x128xf32>
    %cst_11 = arith.constant dense<0.000000e+00> : vector<16xf32>
    %14 = vector.multi_reduction <add>, %13, %cst_11 [1] : vector<16x128xf32> to vector<16xf32>
    %15 = vector.shape_cast %14 : vector<16xf32> to vector<16x1xf32>
    %cst_12 = arith.constant dense<0.000000e+00> : vector<1xf32>
    %16 = vector.multi_reduction <add>, %15, %cst_12 [0] : vector<16x1xf32> to vector<1xf32>
    %17 = vector.shape_cast %16 : vector<1xf32> to vector<1x1xf32>
    %cst_13 = arith.constant 4.8828125E-4 : f32
    %18 = vector.broadcast %cst_13 : f32 to vector<1x1xf32>
    %19 = arith.mulf %12, %18 : vector<1x1xf32>
    %cst_14 = arith.constant 4.8828125E-4 : f32
    %20 = vector.broadcast %cst_14 : f32 to vector<1x1xf32>
    %21 = arith.mulf %17, %20 : vector<1x1xf32>
    %22 = arith.mulf %19, %19 : vector<1x1xf32>
    %23 = arith.subf %21, %22 : vector<1x1xf32>
    %cst_15 = arith.constant 0.000000e+00 : f32
    %24 = vector.broadcast %cst_15 : f32 to vector<1x1xf32>
    %25 = arith.maximumf %23, %24 : vector<1x1xf32>
    %26 = vector.broadcast %19 : vector<1x1xf32> to vector<16x128xf32>
    %27 = arith.subf %1, %26 : vector<16x128xf32>
    %cst_16 = arith.constant 9.99999997E-7 : f32
    %28 = vector.broadcast %cst_16 : f32 to vector<1x1xf32>
    %29 = arith.addf %25, %28 : vector<1x1xf32>
    %30 = math.rsqrt %29 : vector<1x1xf32>
    %31 = vector.broadcast %30 : vector<1x1xf32> to vector<16x128xf32>
    %32 = arith.mulf %27, %31 : vector<16x128xf32>
    %33 = vector.broadcast %2 : vector<1x128xf32> to vector<16x128xf32>
    %34 = arith.mulf %32, %33 : vector<16x128xf32>
    %35 = vector.broadcast %3 : vector<1x128xf32> to vector<16x128xf32>
    %36 = arith.addf %34, %35 : vector<16x128xf32>
    %37 = arith.negf %36 : vector<16x128xf32>
    %38 = math.exp %37 : vector<16x128xf32>
    %cst_17 = arith.constant 1.000000e+00 : f32
    %39 = vector.broadcast %cst_17 : f32 to vector<16x128xf32>
    %40 = arith.addf %39, %38 : vector<16x128xf32>
    %41 = arith.divf %39, %40 : vector<16x128xf32>
    %42 = arith.mulf %36, %41 : vector<16x128xf32>
    %43 = tpu.iota {dimensions = array<i32: 1>} : vector<16x128xi32>
    %c64_i32 = arith.constant 64 : i32
    %44 = vector.broadcast %c64_i32 : i32 to vector<16x128xi32>
    %45 = arith.cmpi slt, %43, %44 : vector<16x128xi32>
    %46 = arith.select %45, %42, %1 : vector<16x128xi1>, vector<16x128xf32>
    %47 = tpu.iota {dimensions = array<i32: 0>} : vector<16x128xi32>
    %c0_i32 = arith.constant 0 : i32
    %48 = vector.broadcast %c0_i32 : i32 to vector<16x128xi32>
    %49 = arith.cmpi eq, %47, %48 : vector<16x128xi32>
    %c1_i32 = arith.constant 1 : i32
    %50 = tpu.dynamic_rotate %46 by %c1_i32 dim 0 : vector<16x128xf32>, i32 -> vector<16x128xf32>
    %cst_18 = arith.constant 0.000000e+00 : f32
    %51 = vector.broadcast %cst_18 : f32 to vector<16x128xf32>
    %52 = arith.select %49, %51, %50 : vector<16x128xi1>, vector<16x128xf32>
    %c15_i32 = arith.constant 15 : i32
    %53 = vector.broadcast %c15_i32 : i32 to vector<16x128xi32>
    %54 = arith.cmpi eq, %47, %53 : vector<16x128xi32>
    %c15_i32_19 = arith.constant 15 : i32
    %55 = tpu.dynamic_rotate %46 by %c15_i32_19 dim 0 : vector<16x128xf32>, i32 -> vector<16x128xf32>
    %cst_20 = arith.constant 0.000000e+00 : f32
    %56 = vector.broadcast %cst_20 : f32 to vector<16x128xf32>
    %57 = arith.select %54, %56, %55 : vector<16x128xi1>, vector<16x128xf32>
    %c0_21 = arith.constant 0 : index
    %c0_22 = arith.constant 0 : index
    %c0_23 = arith.constant 0 : index
    %58 = vector.load %arg3[%c0_21, %c0_22, %c0_23] : memref<3x256x256xf32, #tpu.memory_space<vmem>>, vector<1x128x256xf32>
    %59 = vector.shape_cast %58 : vector<1x128x256xf32> to vector<128x256xf32>
    %cst_24 = arith.constant dense<0.000000e+00> : vector<16x256xf32>
    %60 = tpu.matmul %52, %59, %cst_24 {dimension_numbers = #tpu.dot_dimension_numbers<[1], [0], [0], [1], [0, 0, 1, 1], [], []>} : vector<16x128xf32>, vector<128x256xf32>, vector<16x256xf32> -> vector<16x256xf32>
    %c1_25 = arith.constant 1 : index
    %c0_26 = arith.constant 0 : index
    %c0_27 = arith.constant 0 : index
    %61 = vector.load %arg3[%c1_25, %c0_26, %c0_27] : memref<3x256x256xf32, #tpu.memory_space<vmem>>, vector<1x128x256xf32>
    %62 = vector.shape_cast %61 : vector<1x128x256xf32> to vector<128x256xf32>
    %cst_28 = arith.constant dense<0.000000e+00> : vector<16x256xf32>
    %63 = tpu.matmul %46, %62, %cst_28 {dimension_numbers = #tpu.dot_dimension_numbers<[1], [0], [0], [1], [0, 0, 1, 1], [], []>} : vector<16x128xf32>, vector<128x256xf32>, vector<16x256xf32> -> vector<16x256xf32>
    %64 = arith.addf %60, %63 : vector<16x256xf32>
    %c2_29 = arith.constant 2 : index
    %c0_30 = arith.constant 0 : index
    %c0_31 = arith.constant 0 : index
    %65 = vector.load %arg3[%c2_29, %c0_30, %c0_31] : memref<3x256x256xf32, #tpu.memory_space<vmem>>, vector<1x128x256xf32>
    %66 = vector.shape_cast %65 : vector<1x128x256xf32> to vector<128x256xf32>
    %cst_32 = arith.constant dense<0.000000e+00> : vector<16x256xf32>
    %67 = tpu.matmul %57, %66, %cst_32 {dimension_numbers = #tpu.dot_dimension_numbers<[1], [0], [0], [1], [0, 0, 1, 1], [], []>} : vector<16x128xf32>, vector<128x256xf32>, vector<16x256xf32> -> vector<16x256xf32>
    %68 = arith.addf %64, %67 : vector<16x256xf32>
    %69 = vector.extract_strided_slice %68 {offsets = [0, 0], sizes = [16, 128], strides = [1, 1]} : vector<16x256xf32> to vector<16x128xf32>
    %70 = vector.extract_strided_slice %68 {offsets = [0, 128], sizes = [16, 128], strides = [1, 1]} : vector<16x256xf32> to vector<16x128xf32>
    %c0_33 = arith.constant 0 : index
    %c0_34 = arith.constant 0 : index
    %c0_35 = arith.constant 0 : index
    %71 = vector.load %arg2[%c0_33, %c0_34, %c0_35] : memref<1x1x32xf32, #tpu.memory_space<vmem>>, vector<1x1x32xf32>
    %72 = vector.shape_cast %71 : vector<1x1x32xf32> to vector<1x32xf32>
    %73 = arith.negf %72 : vector<1x32xf32>
    %74 = math.exp %73 : vector<1x32xf32>
    %cst_36 = arith.constant 1.000000e+00 : f32
    %75 = vector.broadcast %cst_36 : f32 to vector<1x32xf32>
    %76 = arith.addf %75, %74 : vector<1x32xf32>
    %77 = arith.divf %75, %76 : vector<1x32xf32>
    %78 = arith.mulf %72, %77 : vector<1x32xf32>
    %cst_37 = arith.constant dense<0.000000e+00> : vector<1x128xf32>
    %79 = tpu.matmul %78, %8, %cst_37 {dimension_numbers = #tpu.dot_dimension_numbers<[1], [0], [0], [1], [0, 0, 1, 1], [], []>} : vector<1x32xf32>, vector<32x128xf32>, vector<1x128xf32> -> vector<1x128xf32>
    %80 = arith.addf %79, %4 : vector<1x128xf32>
    %81 = vector.broadcast %80 : vector<1x128xf32> to vector<16x128xf32>
    %82 = arith.addf %69, %81 : vector<16x128xf32>
    %cst_38 = arith.constant dense<0.000000e+00> : vector<16xf32>
    %83 = vector.multi_reduction <add>, %82, %cst_38 [1] : vector<16x128xf32> to vector<16xf32>
    %84 = vector.shape_cast %83 : vector<16xf32> to vector<16x1xf32>
    %cst_39 = arith.constant dense<0.000000e+00> : vector<1xf32>
    %85 = vector.multi_reduction <add>, %84, %cst_39 [0] : vector<16x1xf32> to vector<1xf32>
    %86 = vector.shape_cast %85 : vector<1xf32> to vector<1x1xf32>
    %87 = arith.mulf %82, %82 : vector<16x128xf32>
    %cst_40 = arith.constant dense<0.000000e+00> : vector<16xf32>
    %88 = vector.multi_reduction <add>, %87, %cst_40 [1] : vector<16x128xf32> to vector<16xf32>
    %89 = vector.shape_cast %88 : vector<16xf32> to vector<16x1xf32>
    %cst_41 = arith.constant dense<0.000000e+00> : vector<1xf32>
    %90 = vector.multi_reduction <add>, %89, %cst_41 [0] : vector<16x1xf32> to vector<1xf32>
    %91 = vector.shape_cast %90 : vector<1xf32> to vector<1x1xf32>
    %cst_42 = arith.constant 4.8828125E-4 : f32
    %92 = vector.broadcast %cst_42 : f32 to vector<1x1xf32>
    %93 = arith.mulf %86, %92 : vector<1x1xf32>
    %cst_43 = arith.constant 4.8828125E-4 : f32
    %94 = vector.broadcast %cst_43 : f32 to vector<1x1xf32>
    %95 = arith.mulf %91, %94 : vector<1x1xf32>
    %96 = arith.mulf %93, %93 : vector<1x1xf32>
    %97 = arith.subf %95, %96 : vector<1x1xf32>
    %cst_44 = arith.constant 0.000000e+00 : f32
    %98 = vector.broadcast %cst_44 : f32 to vector<1x1xf32>
    %99 = arith.maximumf %97, %98 : vector<1x1xf32>
    %100 = vector.broadcast %93 : vector<1x1xf32> to vector<16x128xf32>
    %101 = arith.subf %82, %100 : vector<16x128xf32>
    %cst_45 = arith.constant 9.99999997E-7 : f32
    %102 = vector.broadcast %cst_45 : f32 to vector<1x1xf32>
    %103 = arith.addf %99, %102 : vector<1x1xf32>
    %104 = math.rsqrt %103 : vector<1x1xf32>
    %105 = vector.broadcast %104 : vector<1x1xf32> to vector<16x128xf32>
    %106 = arith.mulf %101, %105 : vector<16x128xf32>
    %107 = vector.broadcast %5 : vector<1x128xf32> to vector<16x128xf32>
    %108 = arith.mulf %106, %107 : vector<16x128xf32>
    %109 = vector.broadcast %6 : vector<1x128xf32> to vector<16x128xf32>
    %110 = arith.addf %108, %109 : vector<16x128xf32>
    %111 = arith.negf %110 : vector<16x128xf32>
    %112 = math.exp %111 : vector<16x128xf32>
    %cst_46 = arith.constant 1.000000e+00 : f32
    %113 = vector.broadcast %cst_46 : f32 to vector<16x128xf32>
    %114 = arith.addf %113, %112 : vector<16x128xf32>
    %115 = arith.divf %113, %114 : vector<16x128xf32>
    %116 = arith.mulf %110, %115 : vector<16x128xf32>
    %117 = tpu.iota {dimensions = array<i32: 0>} : vector<16x128xi32>
    %c0_i32_47 = arith.constant 0 : i32
    %118 = vector.broadcast %c0_i32_47 : i32 to vector<16x128xi32>
    %119 = arith.cmpi eq, %117, %118 : vector<16x128xi32>
    %c1_i32_48 = arith.constant 1 : i32
    %120 = tpu.dynamic_rotate %116 by %c1_i32_48 dim 0 : vector<16x128xf32>, i32 -> vector<16x128xf32>
    %cst_49 = arith.constant 0.000000e+00 : f32
    %121 = vector.broadcast %cst_49 : f32 to vector<16x128xf32>
    %122 = arith.select %119, %121, %120 : vector<16x128xi1>, vector<16x128xf32>
    %c15_i32_50 = arith.constant 15 : i32
    %123 = vector.broadcast %c15_i32_50 : i32 to vector<16x128xi32>
    %124 = arith.cmpi eq, %117, %123 : vector<16x128xi32>
    %c15_i32_51 = arith.constant 15 : i32
    %125 = tpu.dynamic_rotate %116 by %c15_i32_51 dim 0 : vector<16x128xf32>, i32 -> vector<16x128xf32>
    %cst_52 = arith.constant 0.000000e+00 : f32
    %126 = vector.broadcast %cst_52 : f32 to vector<16x128xf32>
    %127 = arith.select %124, %126, %125 : vector<16x128xi1>, vector<16x128xf32>
    %c0_53 = arith.constant 0 : index
    %c128 = arith.constant 128 : index
    %c0_54 = arith.constant 0 : index
    %128 = vector.load %arg3[%c0_53, %c128, %c0_54] : memref<3x256x256xf32, #tpu.memory_space<vmem>>, vector<1x128x128xf32>
    %129 = vector.shape_cast %128 : vector<1x128x128xf32> to vector<128x128xf32>
    %cst_55 = arith.constant dense<0.000000e+00> : vector<16x128xf32>
    %130 = tpu.matmul %122, %129, %cst_55 {dimension_numbers = #tpu.dot_dimension_numbers<[1], [0], [0], [1], [0, 0, 1, 1], [], []>} : vector<16x128xf32>, vector<128x128xf32>, vector<16x128xf32> -> vector<16x128xf32>
    %c1_56 = arith.constant 1 : index
    %c128_57 = arith.constant 128 : index
    %c0_58 = arith.constant 0 : index
    %131 = vector.load %arg3[%c1_56, %c128_57, %c0_58] : memref<3x256x256xf32, #tpu.memory_space<vmem>>, vector<1x128x128xf32>
    %132 = vector.shape_cast %131 : vector<1x128x128xf32> to vector<128x128xf32>
    %cst_59 = arith.constant dense<0.000000e+00> : vector<16x128xf32>
    %133 = tpu.matmul %116, %132, %cst_59 {dimension_numbers = #tpu.dot_dimension_numbers<[1], [0], [0], [1], [0, 0, 1, 1], [], []>} : vector<16x128xf32>, vector<128x128xf32>, vector<16x128xf32> -> vector<16x128xf32>
    %134 = arith.addf %130, %133 : vector<16x128xf32>
    %c2_60 = arith.constant 2 : index
    %c128_61 = arith.constant 128 : index
    %c0_62 = arith.constant 0 : index
    %135 = vector.load %arg3[%c2_60, %c128_61, %c0_62] : memref<3x256x256xf32, #tpu.memory_space<vmem>>, vector<1x128x128xf32>
    %136 = vector.shape_cast %135 : vector<1x128x128xf32> to vector<128x128xf32>
    %cst_63 = arith.constant dense<0.000000e+00> : vector<16x128xf32>
    %137 = tpu.matmul %127, %136, %cst_63 {dimension_numbers = #tpu.dot_dimension_numbers<[1], [0], [0], [1], [0, 0, 1, 1], [], []>} : vector<16x128xf32>, vector<128x128xf32>, vector<16x128xf32> -> vector<16x128xf32>
    %138 = arith.addf %134, %137 : vector<16x128xf32>
    %139 = arith.addf %138, %70 : vector<16x128xf32>
    %140 = vector.broadcast %7 : vector<1x128xf32> to vector<16x128xf32>
    %141 = arith.addf %139, %140 : vector<16x128xf32>
    %cst_64 = arith.constant 0.707106769 : f32
    %142 = vector.broadcast %cst_64 : f32 to vector<16x128xf32>
    %143 = arith.mulf %141, %142 : vector<16x128xf32>
    %c0_65 = arith.constant 0 : index
    %c0_66 = arith.constant 0 : index
    %c0_67 = arith.constant 0 : index
    %144 = vector.load %arg5[%c0_65, %c0_66, %c0_67] : memref<1x16x128xf32, #tpu.memory_space<vmem>>, vector<1x16x128xf32>
    %145 = vector.shape_cast %144 : vector<1x16x128xf32> to vector<16x128xf32>
    %146 = vector.shape_cast %143 : vector<16x128xf32> to vector<1x16x128xf32>
    tpu.vector_store %arg5[%c0_65, %c0_66, %c0_67], %146 {strides = array<i32>} : memref<1x16x128xf32, #tpu.memory_space<vmem>>, vector<1x16x128xf32>,
    return
  }
  func.func @transform_0(%arg0: i32) -> (i32, i32, i32) {
    %c0_i32 = arith.constant 0 : i32
    %c0_i32_0 = arith.constant 0 : i32
    %c0_i32_1 = arith.constant 0 : i32
    return %arg0, %c0_i32, %c0_i32_0 : i32, i32, i32
  }
  func.func @transform_1(%arg0: i32) -> (i32, i32, i32) {
    %c0_i32 = arith.constant 0 : i32
    %c0_i32_0 = arith.constant 0 : i32
    %c0_i32_1 = arith.constant 0 : i32
    return %arg0, %c0_i32, %c0_i32_0 : i32, i32, i32
  }
  func.func @transform_2(%arg0: i32) -> (i32, i32, i32) {
    %c0_i32 = arith.constant 0 : i32
    %c0_i32_0 = arith.constant 0 : i32
    %c0_i32_1 = arith.constant 0 : i32
    %c0_i32_2 = arith.constant 0 : i32
    return %c0_i32, %c0_i32_0, %c0_i32_1 : i32, i32, i32
  }
  func.func @transform_3(%arg0: i32) -> (i32, i32) {
    %c0_i32 = arith.constant 0 : i32
    %c0_i32_0 = arith.constant 0 : i32
    %c0_i32_1 = arith.constant 0 : i32
    return %c0_i32, %c0_i32_0 : i32, i32
  }
  func.func @transform_4(%arg0: i32) -> (i32, i32, i32) {
    %c0_i32 = arith.constant 0 : i32
    %c0_i32_0 = arith.constant 0 : i32
    %c0_i32_1 = arith.constant 0 : i32
    return %arg0, %c0_i32, %c0_i32_0 : i32, i32, i32
  }
}

</mosaic_0001>

<llo_original>
// kernel: resnet_block_biggan.1
$region0: #{resnet_block_biggan.1}
  #allocation0 [shape = 'u32[]', space=smem, size = 0x4, offset = 0x4, fixed_abs, tag = 'smem constant byte address 0x4 - core index']
  #allocation1 [shape = 'u32[144,128]{1,0:T(1,128)}', space=vmem, size = 0x12000, scoped, tag = 'internal scratch']
  %s0 = inlined_call_operand.vmem [shape: f32[2,16,128], index: 0, kind: input, shape index: {}]
  %s1 = inlined_call_operand.vmem [shape: f32[2,1,32], index: 1, kind: input, shape index: {}]
  %s2 = inlined_call_operand.hbm [shape: f32[3,256,256], index: 2, kind: input, shape index: {}]
  %s3 = inlined_call_operand.vmem [shape: f32[40,128], index: 3, kind: input, shape index: {}]
  %s4 = inlined_call_operand.vmem [shape: f32[2,16,128], index: 4, kind: output, shape index: {}]
  %s5 = sld [smem:[#allocation0]]
  $region53: #{resnet_block_biggan.1} parent=0
    _
  %s7 = ssub.s32 1, %s5
  %s8 = scalar_select 0, %s7, %s5
  $region1: #{resnet_block_biggan.1} parent=0
    #allocation2 [shape = 'u8[786432]{0}', space=vmem, size = 0xc0000, scoped, tag = 'input window, operand 2, single buffered']
    #allocation3 [shape = 's32[2]{0}', space=sflag, size = 0x8, scoped, tag = 'scoped memory for resnet_block_biggan.1']
    %9 = vsyncpa [#allocation3], 0
    loop: start=0, step=1, limit=4
    $region2: #{resnet_block_biggan.1} parent=1 // loop_pre_header
      _
    $region3: #{resnet_block_biggan.1} parent=1 // loop_header
      %s11 = sphi 0, %s15
      %p12 = scmp.ge.s32.totalorder %s11, 4
      %s21 = sphi 0, %s23
      %s24 = sphi 0, %s21
      %s25 = sphi 0, %s24
      %s41 = sphi 0, %s25
      %s47 = sphi 0, %s49
      %s50 = sphi 0, %s47
      %s51 = sphi 0, %s50
      %s67 = sphi 0, %s51
      %s71 = sphi 0, %s71
      %s73 = sphi 0, %s71
      %s74 = sphi 0, %s73
      %s88 = sphi 0, %s74
      %s92 = sphi 0, %s92
      %s94 = sphi 0, %s92
      %s95 = sphi 0, %s94
      %s109 = sphi 0, %s95
      %s115 = sphi 0, %s117
      %s118 = sphi 0, %s115
      %s119 = sphi 0, %s118
      %s135 = sphi 0, %s119
    $region4: #{resnet_block_biggan.1} parent=1 // loop_header_branch
      %14 = sbr.rel (%p12) target = $region8
    $region5: #{resnet_block_biggan.1} parent=1 // loop_body
      %s16 = ssub.s32 %s11, 1
      %s17 = ssub.s32 %s11, 2
      %s18 = sadd.s32 %s11, 1
      %s19 = ssub.s32 %s11, %s18
      %p20 = scmp.eq.s32.totalorder %s19, 0
      %s22 = sadd.s32 %s21, 1
      %s23 = scalar_select %p20, %s21, %s22
      %p26 = pneg %p20
      %p27 = scmp.eq.s32.totalorder %s11, 1
      %p28 = por %p26, %p27
      %p29 = scmp.ne.s32.totalorder %s21, %s24
      %p30 = scmp.eq.s32.totalorder %s11, 0
      %p31 = por %p29, %p30
      %p32 = scmp.ne.s32.totalorder %s21, %s24
      %p33 = scmp.eq.s32.totalorder %s16, 1
      %p34 = por %p32, %p33
      %p35 = scmp.ne.s32.totalorder %s24, %s25
      %p36 = scmp.eq.s32.totalorder %s16, 0
      %p37 = por %p35, %p36
      %p38 = scmp.ne.s32.totalorder %s24, %s25
      %p39 = scmp.eq.s32.totalorder %s17, 1
      %p40 = por %p38, %p39
      %p42 = scmp.ne.s32.totalorder %s25, %s41
      %p43 = scmp.eq.s32.totalorder %s17, 0
      %p44 = por %p42, %p43
      %s45 = ssub.s32 %s11, %s18
      %p46 = scmp.eq.s32.totalorder %s45, 0
      %s48 = sadd.s32 %s47, 1
      %s49 = scalar_select %p46, %s47, %s48
      %p52 = pneg %p46
      %p53 = scmp.eq.s32.totalorder %s11, 1
      %p54 = por %p52, %p53
      %p55 = scmp.ne.s32.totalorder %s47, %s50
      %p56 = scmp.eq.s32.totalorder %s11, 0
      %p57 = por %p55, %p56
      %p58 = scmp.ne.s32.totalorder %s47, %s50
      %p59 = scmp.eq.s32.totalorder %s16, 1
      %p60 = por %p58, %p59
      %p61 = scmp.ne.s32.totalorder %s50, %s51
      %p62 = scmp.eq.s32.totalorder %s16, 0
      %p63 = por %p61, %p62
      %p64 = scmp.ne.s32.totalorder %s50, %s51
      %p65 = scmp.eq.s32.totalorder %s17, 1
      %p66 = por %p64, %p65
      %p68 = scmp.ne.s32.totalorder %s51, %s67
      %p69 = scmp.eq.s32.totalorder %s17, 0
      %p70 = por %p68, %p69
      %s72 = sadd.s32 %s71, 1
      %p75 = scmp.eq.s32.totalorder %s11, 1
      %p76 = scmp.ne.s32.totalorder %s71, %s73
      %p77 = scmp.eq.s32.totalorder %s11, 0
      %p78 = por %p76, %p77
      %p79 = scmp.ne.s32.totalorder %s71, %s73
      %p80 = scmp.eq.s32.totalorder %s16, 1
      %p81 = por %p79, %p80
      %p82 = scmp.ne.s32.totalorder %s73, %s74
      %p83 = scmp.eq.s32.totalorder %s16, 0
      %p84 = por %p82, %p83
      %p85 = scmp.ne.s32.totalorder %s73, %s74
      %p86 = scmp.eq.s32.totalorder %s17, 1
      %p87 = por %p85, %p86
      %p89 = scmp.ne.s32.totalorder %s74, %s88
      %p90 = scmp.eq.s32.totalorder %s17, 0
      %p91 = por %p89, %p90
      %s93 = sadd.s32 %s92, 1
      %p96 = scmp.eq.s32.totalorder %s11, 1
      %p97 = scmp.ne.s32.totalorder %s92, %s94
      %p98 = scmp.eq.s32.totalorder %s11, 0
      %p99 = por %p97, %p98
      %p100 = scmp.ne.s32.totalorder %s92, %s94
      %p101 = scmp.eq.s32.totalorder %s16, 1
      %p102 = por %p100, %p101
      %p103 = scmp.ne.s32.totalorder %s94, %s95
      %p104 = scmp.eq.s32.totalorder %s16, 0
      %p105 = por %p103, %p104
      %p106 = scmp.ne.s32.totalorder %s94, %s95
      %p107 = scmp.eq.s32.totalorder %s17, 1
      %p108 = por %p106, %p107
      %p110 = scmp.ne.s32.totalorder %s95, %s109
      %p111 = scmp.eq.s32.totalorder %s17, 0
      %p112 = por %p110, %p111
      %s113 = ssub.s32 %s11, %s18
      %p114 = scmp.eq.s32.totalorder %s113, 0
      %s116 = sadd.s32 %s115, 1
      %s117 = scalar_select %p114, %s115, %s116
      %p120 = pneg %p114
      %p121 = scmp.eq.s32.totalorder %s11, 1
      %p122 = por %p120, %p121
      %p123 = scmp.ne.s32.totalorder %s115, %s118
      %p124 = scmp.eq.s32.totalorder %s11, 0
      %p125 = por %p123, %p124
      %p126 = scmp.ne.s32.totalorder %s115, %s118
      %p127 = scmp.eq.s32.totalorder %s16, 1
      %p128 = por %p126, %p127
      %p129 = scmp.ne.s32.totalorder %s118, %s119
      %p130 = scmp.eq.s32.totalorder %s16, 0
      %p131 = por %p129, %p130
      %p132 = scmp.ne.s32.totalorder %s118, %s119
      %p133 = scmp.eq.s32.totalorder %s17, 1
      %p134 = por %p132, %p133
      %p136 = scmp.ne.s32.totalorder %s119, %s135
      %p137 = scmp.eq.s32.totalorder %s17, 0
      %p138 = por %p136, %p137
      %p139 = scmp.le.s32.totalorder 1, %s11
      %p140 = scmp.lt.s32.totalorder %s11, 3
      %p141 = pnand %p139, %p140
      %p142 = pneg %p141
      // Predicated region
      $region9: #{resnet_block_biggan.1} parent=5 // pred_check
        _
      $region10: #{resnet_block_biggan.1} parent=5 // pred_check_branch
        %144 = sbr.rel (%p141) target = $region12
      $region11: #{resnet_block_biggan.1} parent=5 // pred_region
        %s145 = ssub.s32 %s11, 1
        // Predicated region
        $region13: #{resnet_block_biggan.1} parent=11 // pred_check
          %p146 = pneg %p84
        $region14: #{resnet_block_biggan.1} parent=11 // pred_check_branch
          %148 = sbr.rel (%p146) target = $region16
        $region15: #{resnet_block_biggan.1} parent=11 // pred_region
          %s150 = ssub.s32 24576, 24576
          %151 = vsyncadd [#allocation3], %s150
          %s152 = sshll.u32 [#allocation2], 4
          %s153 = int_to_ptr.vmem [resolvable:$true] %s152
          %158 = dma.hbm_to_vmem [thread:$0]  %s2, 24576, %s153, [#allocation3], 256, 256, 16
        $region16: #{resnet_block_biggan.1} parent=11 // pred_fallthru
          _
        // Predicated region
        $region17: #{resnet_block_biggan.1} parent=11 // pred_check
          %p159 = pneg %p105
        $region18: #{resnet_block_biggan.1} parent=11 // pred_check_branch
          %161 = sbr.rel (%p159) target = $region20
        $region19: #{resnet_block_biggan.1} parent=11 // pred_region
          _
        $region20: #{resnet_block_biggan.1} parent=11 // pred_fallthru
          _
      $region12: #{resnet_block_biggan.1} parent=5 // pred_fallthru
        _
      %p162 = scmp.lt.s32.totalorder %s11, 2
      // Predicated region
      $region21: #{resnet_block_biggan.1} parent=5 // pred_check
        %p163 = pneg %p162
      $region22: #{resnet_block_biggan.1} parent=5 // pred_check_branch
        %165 = sbr.rel (%p163) target = $region24
      $region23: #{resnet_block_biggan.1} parent=5 // pred_region
        // Predicated region
        $region25: #{resnet_block_biggan.1} parent=23 // pred_check
          %p166 = pneg %p31
        $region26: #{resnet_block_biggan.1} parent=23 // pred_check_branch
          %168 = sbr.rel (%p166) target = $region28
        $region27: #{resnet_block_biggan.1} parent=23 // pred_region
          %p169 = scmp.lt.s32.totalorder %s11, 1
          %s170 = scalar_select %p169, %s11, 1
          %s171 = smul.addr %s170, 2
          %s172 = smul.addr %s171, 8
          %s173 = scalar_lea.vmem %s0, %s172
        $region28: #{resnet_block_biggan.1} parent=23 // pred_fallthru
          _
        // Predicated region
        $region29: #{resnet_block_biggan.1} parent=23 // pred_check
          %p174 = pneg %p57
        $region30: #{resnet_block_biggan.1} parent=23 // pred_check_branch
          %176 = sbr.rel (%p174) target = $region32
        $region31: #{resnet_block_biggan.1} parent=23 // pred_region
          %p177 = scmp.lt.s32.totalorder %s11, 1
          %s178 = scalar_select %p177, %s11, 1
          %s179 = scalar_lea.vmem %s1, %s178
        $region32: #{resnet_block_biggan.1} parent=23 // pred_fallthru
          _
      $region24: #{resnet_block_biggan.1} parent=5 // pred_fallthru
        _
      %p180 = scmp.le.s32.totalorder 1, %s11
      %p181 = scmp.lt.s32.totalorder %s11, 3
      %p182 = pnand %p180, %p181
      %p183 = pneg %p182
      // Predicated region
      $region33: #{resnet_block_biggan.1} parent=5 // pred_check
        _
      $region34: #{resnet_block_biggan.1} parent=5 // pred_check_branch
        %185 = sbr.rel (%p182) target = $region36
      $region35: #{resnet_block_biggan.1} parent=5 // pred_region
        %s186 = ssub.s32 %s11, 1
        // Predicated region
        $region37: #{resnet_block_biggan.1} parent=35 // pred_check
          %p187 = pneg %p84
        $region38: #{resnet_block_biggan.1} parent=35 // pred_check_branch
          %189 = sbr.rel (%p187) target = $region40
        $region39: #{resnet_block_biggan.1} parent=35 // pred_region
          %190 = dma.done [#allocation3], 24576
        $region40: #{resnet_block_biggan.1} parent=35 // pred_fallthru
          _
        %p191 = scmp.lt.s32.totalorder %s16, 1
        %s192 = scalar_select %p191, %s16, 1
        %s193 = smul.addr %s192, 2
        %s194 = smul.addr %s193, 8
        %s195 = scalar_lea.vmem %s0, %s194
        %p196 = pneg %p37
        %p197 = pneg %p34
        %p198 = scmp.lt.s32.totalorder %s16, 1
        %s199 = scalar_select %p198, %s16, 1
        %s200 = scalar_lea.vmem %s1, %s199
        %p201 = pneg %p63
        %p202 = pneg %p60
        %p203 = pneg %p84
        %p204 = pneg %p81
        %p205 = pneg %p105
        %p206 = pneg %p102
        %p207 = pneg %p131
        %p208 = pneg %p128
        %p209 = scmp.lt.s32.totalorder %s16, 1
        %s210 = scalar_select %p209, %s16, 1
        %s211 = smul.addr %s210, 2
        %s212 = smul.addr %s211, 8
        %s213 = scalar_lea.vmem %s4, %s212
        %p214 = scmp.lt.s32.totalorder %s16, 1
        %s215 = scalar_select %p214, %s16, 1
        %s216 = smul.addr %s215, 2
        %s217 = smul.addr %s216, 8
        %s218 = scalar_lea.vmem %s0, %s217
        %p219 = scmp.lt.s32.totalorder %s16, 1
        %s220 = scalar_select %p219, %s16, 1
        %s221 = scalar_lea.vmem %s1, %s220
        %p222 = scmp.lt.s32.totalorder %s16, 1
        %s223 = scalar_select %p222, %s16, 1
        %s224 = smul.addr %s223, 2
        %s225 = smul.addr %s224, 8
        %s226 = scalar_lea.vmem %s4, %s225
        %v227 = vld [vmem:[%s218] sm:$0xff]
        %v228 = vld [vmem:[%s218 + $0x8] sm:$0xff]
        %v229 = vld [vmem:[%s3] sm:$0x1]
        %v230 = vld [vmem:[%s3 + $0x1] sm:$0x1]
        %v231 = vld [vmem:[%s3 + $0x2] sm:$0x1]
        %v232 = vld [vmem:[%s3 + $0x3] sm:$0x1]
        %v233 = vld [vmem:[%s3 + $0x4] sm:$0x1]
        %v234 = vld [vmem:[%s3 + $0x5] sm:$0x1]
        %v235 = vld [vmem:[%s3 + $0x8] sm:$0xff]
        %v236 = vld [vmem:[%s3 + $0x10] sm:$0xff]
        %v237 = vld [vmem:[%s3 + $0x18] sm:$0xff]
        %v238 = vld [vmem:[%s3 + $0x20] sm:$0xff]
        %239 = vadd.xlane.f32.xlu0 %v227
        %v240 = vpop.xlane.xlu0 %239
        %241 = vadd.xlane.f32.xlu0 %v228
        %v242 = vpop.xlane.xlu0 %241
        %v243 = vadd.f32 %v240, %v242
        %v244 = vrot.slane %v243, 4
        %v245 = vadd.f32 %v243, %v244
        %v246 = vrot.slane %v245, 2
        %v247 = vadd.f32 %v245, %v246
        %v248 = vrot.slane %v247, 1
        %v249 = vadd.f32 %v247, %v248
        %v250 = vmul.f32 %v227, %v227
        %v251 = vmul.f32 %v228, %v228
        %252 = vadd.xlane.f32.xlu0 %v250
        %v253 = vpop.xlane.xlu0 %252
        %254 = vadd.xlane.f32.xlu0 %v251
        %v255 = vpop.xlane.xlu0 %254
        %v256 = vadd.f32 %v253, %v255
        %v257 = vrot.slane %v256, 4
        %v258 = vadd.f32 %v256, %v257
        %v259 = vrot.slane %v258, 2
        %v260 = vadd.f32 %v258, %v259
        %v261 = vrot.slane %v260, 1
        %v262 = vadd.f32 %v260, %v261
        %v263 = vmul.f32 %v249, 0.00048828125
        %v264 = vmul.f32 %v262, 0.00048828125
        %v265 = vmul.f32 %v263, %v263
        %v266 = vsub.f32 %v264, %v265
        %v267 = vmax.f32 %v266, 0.0
        %v268 = vsub.f32 %v227, %v263
        %v269 = vsub.f32 %v228, %v263
        %v270 = vadd.f32 %v267, 1e-06
        %v271 = vrsqrt.pop %v270
        %v272 = vmul.f32 %v268, %v271
        %v273 = vmul.f32 %v269, %v271
        %v274 = vlaneseq
        %v275 = vshrl.u32 %v274, 7
        %v276 = vsub.s32 0, %v275
        %v277 = vrot.slane %v229, %v276
        %v278 = vmul.f32 %v272, %v277
        %v279 = vmul.f32 %v273, %v277
        %v280 = vlaneseq
        %v281 = vshrl.u32 %v280, 7
        %v282 = vsub.s32 0, %v281
        %v283 = vrot.slane %v230, %v282
        %v284 = vadd.f32 %v278, %v283
        %v285 = vadd.f32 %v279, %v283
        %v286 = vxor.u32 %v284, 2147483648
        %v287 = vxor.u32 %v285, 2147483648
        %v288 = vmul.f32 %v286, 1.442695
        %v289 = vpow.pop %v288
        %v290 = vmul.f32 %v287, 1.442695
        %v291 = vpow.pop %v290
        %v292 = vadd.f32 %v289, 1.0
        %v293 = vadd.f32 %v291, 1.0
        %v294 = vrcp.pop %v292
        %v295 = vmul.f32 1.0, %v294
        %v296 = vrcp.pop %v293
        %v297 = vmul.f32 1.0, %v296
        %v298 = vmul.f32 %v284, %v295
        %v299 = vmul.f32 %v285, %v297
        %v300 = vlaneseq
        %v301 = vand.u32 %v300, 127
        %vm302 = vcmp.lt.s32.totalorder %v301, 64
        %v303 = vsel %vm302, %v298, %v227
        %v304 = vsel %vm302, %v299, %v228
        %v305 = vlaneseq
        %v306 = vshrl.u32 %v305, 7
        %v307 = vadd.s32 %v306, 8
        %vm308 = vcmp.eq.s32.totalorder %v306, 0
        %vm309 = vcmp.eq.s32.totalorder %v307, 0
        %v310 = vrot.slane %v303, 7
        %v311 = vrot.slane %v304, 7
        %vm312 = vcmp.lt.s32.totalorder %v306, 1
        %v313 = vsel %vm312, %v310, %v311
        %v314 = vsel %vm312, %v311, %v310
        %v315 = vsel %vm308, 0.0, %v314
        %v316 = vsel %vm309, 0.0, %v313
        %vm317 = vcmp.eq.s32.totalorder %v306, 15
        %vm318 = vcmp.eq.s32.totalorder %v307, 15
        %v319 = vrot.slane %v303, 1
        %v320 = vrot.slane %v304, 1
        %vm321 = vcmp.lt.s32.totalorder %v306, 7
        %v322 = vsel %vm321, %v319, %v320
        %v323 = vsel %vm321, %v320, %v319
        %v324 = vsel %vm317, 0.0, %v322
        %v325 = vsel %vm318, 0.0, %v323
        %v326 = vld [vmem:[#allocation2] sm:$0xff]
        %v327 = vld [vmem:[#allocation2 + $0x8] sm:$0xff]
        %v328 = vld [vmem:[#allocation2 + $0x10] sm:$0xff]
        %v329 = vld [vmem:[#allocation2 + $0x18] sm:$0xff]
        %v330 = vld [vmem:[#allocation2 + $0x20] sm:$0xff]
        %v331 = vld [vmem:[#allocation2 + $0x28] sm:$0xff]
        %v332 = vld [vmem:[#allocation2 + $0x30] sm:$0xff]
        %v333 = vld [vmem:[#allocation2 + $0x38] sm:$0xff]
        %v334 = vld [vmem:[#allocation2 + $0x40] sm:$0xff]
        %v335 = vld [vmem:[#allocation2 + $0x48] sm:$0xff]
        %v336 = vld [vmem:[#allocation2 + $0x50] sm:$0xff]
        %v337 = vld [vmem:[#allocation2 + $0x58] sm:$0xff]
        %v338 = vld [vmem:[#allocation2 + $0x60] sm:$0xff]
        %v339 = vld [vmem:[#allocation2 + $0x68] sm:$0xff]
        %v340 = vld [vmem:[#allocation2 + $0x70] sm:$0xff]
        %v341 = vld [vmem:[#allocation2 + $0x78] sm:$0xff]
        %v342 = vld [vmem:[#allocation2 + $0x80] sm:$0xff]
        %v343 = vld [vmem:[#allocation2 + $0x88] sm:$0xff]
        %v344 = vld [vmem:[#allocation2 + $0x90] sm:$0xff]
        %v345 = vld [vmem:[#allocation2 + $0x98] sm:$0xff]
        %v346 = vld [vmem:[#allocation2 + $0xa0] sm:$0xff]
        %v347 = vld [vmem:[#allocation2 + $0xa8] sm:$0xff]
        %v348 = vld [vmem:[#allocation2 + $0xb0] sm:$0xff]
        %v349 = vld [vmem:[#allocation2 + $0xb8] sm:$0xff]
        %v350 = vld [vmem:[#allocation2 + $0xc0] sm:$0xff]
        %v351 = vld [vmem:[#allocation2 + $0xc8] sm:$0xff]
        %v352 = vld [vmem:[#allocation2 + $0xd0] sm:$0xff]
        %v353 = vld [vmem:[#allocation2 + $0xd8] sm:$0xff]
        %v354 = vld [vmem:[#allocation2 + $0xe0] sm:$0xff]
        %v355 = vld [vmem:[#allocation2 + $0xe8] sm:$0xff]
        %v356 = vld [vmem:[#allocation2 + $0xf0] sm:$0xff]
        %v357 = vld [vmem:[#allocation2 + $0xf8] sm:$0xff]
        %s358 = scalar_lea.vmem [#allocation2], 512
        %v359 = vld [vmem:[%s358] sm:$0xff]
        %v360 = vld [vmem:[%s358 + $0x8] sm:$0xff]
        %v361 = vld [vmem:[%s358 + $0x10] sm:$0xff]
        %v362 = vld [vmem:[%s358 + $0x18] sm:$0xff]
        %v363 = vld [vmem:[%s358 + $0x20] sm:$0xff]
        %v364 = vld [vmem:[%s358 + $0x28] sm:$0xff]
        %v365 = vld [vmem:[%s358 + $0x30] sm:$0xff]
        %v366 = vld [vmem:[%s358 + $0x38] sm:$0xff]
        %v367 = vld [vmem:[%s358 + $0x40] sm:$0xff]
        %v368 = vld [vmem:[%s358 + $0x48] sm:$0xff]
        %v369 = vld [vmem:[%s358 + $0x50] sm:$0xff]
        %v370 = vld [vmem:[%s358 + $0x58] sm:$0xff]
        %v371 = vld [vmem:[%s358 + $0x60] sm:$0xff]
        %v372 = vld [vmem:[%s358 + $0x68] sm:$0xff]
        %v373 = vld [vmem:[%s358 + $0x70] sm:$0xff]
        %v374 = vld [vmem:[%s358 + $0x78] sm:$0xff]
        %v375 = vld [vmem:[%s358 + $0x80] sm:$0xff]
        %v376 = vld [vmem:[%s358 + $0x88] sm:$0xff]
        %v377 = vld [vmem:[%s358 + $0x90] sm:$0xff]
        %v378 = vld [vmem:[%s358 + $0x98] sm:$0xff]
        %v379 = vld [vmem:[%s358 + $0xa0] sm:$0xff]
        %v380 = vld [vmem:[%s358 + $0xa8] sm:$0xff]
        %v381 = vld [vmem:[%s358 + $0xb0] sm:$0xff]
        %v382 = vld [vmem:[%s358 + $0xb8] sm:$0xff]
        %v383 = vld [vmem:[%s358 + $0xc0] sm:$0xff]
        %v384 = vld [vmem:[%s358 + $0xc8] sm:$0xff]
        %v385 = vld [vmem:[%s358 + $0xd0] sm:$0xff]
        %v386 = vld [vmem:[%s358 + $0xd8] sm:$0xff]
        %v387 = vld [vmem:[%s358 + $0xe0] sm:$0xff]
        %v388 = vld [vmem:[%s358 + $0xe8] sm:$0xff]
        %v389 = vld [vmem:[%s358 + $0xf0] sm:$0xff]
        %v390 = vld [vmem:[%s358 + $0xf8] sm:$0xff]
        %391 = vmatprep.subr.mxu0 %v360
        %392 = vmatpush1.msra.mxu0 %v359
        %393 = vmatprep.subr.mxu0 %v362
        %394 = vmatpush1.msra.mxu0 %v361
        %395 = vmatprep.subr.mxu0 %v364
        %396 = vmatpush1.msra.mxu0 %v363
        %397 = vmatprep.subr.mxu0 %v366
        %398 = vmatpush1.msra.mxu0 %v365
        %399 = vmatprep.subr.mxu0 %v368
        %400 = vmatpush1.msra.mxu0 %v367
        %401 = vmatprep.subr.mxu0 %v370
        %402 = vmatpush1.msra.mxu0 %v369
        %403 = vmatprep.subr.mxu0 %v372
        %404 = vmatpush1.msra.mxu0 %v371
        %405 = vmatprep.subr.mxu0 %v374
        %406 = vmatpush1.msra.mxu0 %v373
        %407 = vmatprep.subr.mxu0 %v376
        %408 = vmatpush1.msra.mxu0 %v375
        %409 = vmatprep.subr.mxu0 %v378
        %410 = vmatpush1.msra.mxu0 %v377
        %411 = vmatprep.subr.mxu0 %v380
        %412 = vmatpush1.msra.mxu0 %v379
        %413 = vmatprep.subr.mxu0 %v382
        %414 = vmatpush1.msra.mxu0 %v381
        %415 = vmatprep.subr.mxu0 %v384
        %416 = vmatpush1.msra.mxu0 %v383
        %417 = vmatprep.subr.mxu0 %v386
        %418 = vmatpush1.msra.mxu0 %v385
        %419 = vmatprep.subr.mxu0 %v388
        %420 = vmatpush1.msra.mxu0 %v387
        %421 = vmatprep.subr.mxu0 %v390
        %422 = vmatpush1.msra.mxu0 %v389
        %423 = vmatprep.subr.mxu0 0.0
        %424 = vmatpush1.msra.mxu0 0.0
        %425 = vmatprep.subr.mxu0 0.0
        %426 = vmatpush1.msra.mxu0 0.0
        %427 = vmatprep.subr.mxu0 0.0
        %428 = vmatpush1.msra.mxu0 0.0
        %429 = vmatprep.subr.mxu0 0.0
        %430 = vmatpush1.msra.mxu0 0.0
        %431 = vmatprep.subr.mxu0 0.0
        %432 = vmatpush1.msra.mxu0 0.0
        %433 = vmatprep.subr.mxu0 0.0
        %434 = vmatpush1.msra.mxu0 0.0
        %435 = vmatprep.subr.mxu0 0.0
        %436 = vmatpush1.msra.mxu0 0.0
        %437 = vmatprep.subr.mxu0 0.0
        %438 = vmatpush1.msra.mxu0 0.0
        %439 = vmatprep.subr.mxu0 0.0
        %440 = vmatpush1.msra.mxu0 0.0
        %441 = vmatprep.subr.mxu0 0.0
        %442 = vmatpush1.msra.mxu0 0.0
        %443 = vmatprep.subr.mxu0 0.0
        %444 = vmatpush1.msra.mxu0 0.0
        %445 = vmatprep.subr.mxu0 0.0
        %446 = vmatpush1.msra.mxu0 0.0
        %447 = vmatprep.subr.mxu0 0.0
        %448 = vmatpush1.msra.mxu0 0.0
        %449 = vmatprep.subr.mxu0 0.0
        %450 = vmatpush1.msra.mxu0 0.0
        %451 = vmatprep.subr.mxu0 0.0
        %452 = vmatpush1.msra.mxu0 0.0
        %453 = vmatprep.subr.mxu0 0.0
        %454 = vmatpush1.msra.mxu0 0.0
        %455 = vmatprep.mubr.f32.mxu0 0.0
        %456 = vmatmul.mubr.f32.gmra.mrb[0].mxu0 %v303
        %v457 = vpop.f32.mrb[0].mxu0
        %v458 = vadd.f32 0.0, %v457
        %v459 = vpop.f32.mrb[0].mxu0
        %v460 = vadd.f32 0.0, %v459
        %461 = vmatprep.mubr.f32.mxu0 0.0
        %462 = vmatmul.mubr.f32.gmra.mrb[0].mxu0 %v304
        %v463 = vpop.f32.mrb[0].mxu0
        %v464 = vadd.f32 0.0, %v463
        %v465 = vpop.f32.mrb[0].mxu0
        %v466 = vadd.f32 0.0, %v465
        %467 = vdwg.mxu0
        %468 = vmatprep.subr.mxu0 %v327
        %469 = vmatpush1.msra.mxu0 %v326
        %470 = vmatprep.subr.mxu0 %v329
        %471 = vmatpush1.msra.mxu0 %v328
        %472 = vmatprep.subr.mxu0 %v331
        %473 = vmatpush1.msra.mxu0 %v330
        %474 = vmatprep.subr.mxu0 %v333
        %475 = vmatpush1.msra.mxu0 %v332
        %476 = vmatprep.subr.mxu0 %v335
        %477 = vmatpush1.msra.mxu0 %v334
        %478 = vmatprep.subr.mxu0 %v337
        %479 = vmatpush1.msra.mxu0 %v336
        %480 = vmatprep.subr.mxu0 %v339
        %481 = vmatpush1.msra.mxu0 %v338
        %482 = vmatprep.subr.mxu0 %v341
        %483 = vmatpush1.msra.mxu0 %v340
        %484 = vmatprep.subr.mxu0 %v343
        %485 = vmatpush1.msra.mxu0 %v342
        %486 = vmatprep.subr.mxu0 %v345
        %487 = vmatpush1.msra.mxu0 %v344
        %488 = vmatprep.subr.mxu0 %v347
        %489 = vmatpush1.msra.mxu0 %v346
        %490 = vmatprep.subr.mxu0 %v349
        %491 = vmatpush1.msra.mxu0 %v348
        %492 = vmatprep.subr.mxu0 %v351
        %493 = vmatpush1.msra.mxu0 %v350
        %494 = vmatprep.subr.mxu0 %v353
        %495 = vmatpush1.msra.mxu0 %v352
        %496 = vmatprep.subr.mxu0 %v355
        %497 = vmatpush1.msra.mxu0 %v354
        %498 = vmatprep.subr.mxu0 %v357
        %499 = vmatpush1.msra.mxu0 %v356
        %500 = vmatprep.subr.mxu0 0.0
        %501 = vmatpush1.msra.mxu0 0.0
        %502 = vmatprep.subr.mxu0 0.0
        %503 = vmatpush1.msra.mxu0 0.0
        %504 = vmatprep.subr.mxu0 0.0
        %505 = vmatpush1.msra.mxu0 0.0
        %506 = vmatprep.subr.mxu0 0.0
        %507 = vmatpush1.msra.mxu0 0.0
        %508 = vmatprep.subr.mxu0 0.0
        %509 = vmatpush1.msra.mxu0 0.0
        %510 = vmatprep.subr.mxu0 0.0
        %511 = vmatpush1.msra.mxu0 0.0
        %512 = vmatprep.subr.mxu0 0.0
        %513 = vmatpush1.msra.mxu0 0.0
        %514 = vmatprep.subr.mxu0 0.0
        %515 = vmatpush1.msra.mxu0 0.0
        %516 = vmatprep.subr.mxu0 0.0
        %517 = vmatpush1.msra.mxu0 0.0
        %518 = vmatprep.subr.mxu0 0.0
        %519 = vmatpush1.msra.mxu0 0.0
        %520 = vmatprep.subr.mxu0 0.0
        %521 = vmatpush1.msra.mxu0 0.0
        %522 = vmatprep.subr.mxu0 0.0
        %523 = vmatpush1.msra.mxu0 0.0
        %524 = vmatprep.subr.mxu0 0.0
        %525 = vmatpush1.msra.mxu0 0.0
        %526 = vmatprep.subr.mxu0 0.0
        %527 = vmatpush1.msra.mxu0 0.0
        %528 = vmatprep.subr.mxu0 0.0
        %529 = vmatpush1.msra.mxu0 0.0
        %530 = vmatprep.subr.mxu0 0.0
        %531 = vmatpush1.msra.mxu0 0.0
        %532 = vmatprep.mubr.f32.mxu0 0.0
        %533 = vmatmul.mubr.f32.gmra.mrb[0].mxu0 %v315
        %v534 = vpop.f32.mrb[0].mxu0
        %v535 = vadd.f32 %v458, %v534
        %v536 = vpop.f32.mrb[0].mxu0
        %v537 = vadd.f32 %v460, %v536
        %538 = vmatprep.mubr.f32.mxu0 0.0
        %539 = vmatmul.mubr.f32.gmra.mrb[0].mxu0 %v316
        %v540 = vpop.f32.mrb[0].mxu0
        %v541 = vadd.f32 %v464, %v540
        %v542 = vpop.f32.mrb[0].mxu0
        %v543 = vadd.f32 %v466, %v542
        %544 = vdwg.mxu0
        %s545 = scalar_lea.vmem [#allocation2], 1024
        %v546 = vld [vmem:[%s545] sm:$0xff]
        %v547 = vld [vmem:[%s545 + $0x8] sm:$0xff]
        %v548 = vld [vmem:[%s545 + $0x10] sm:$0xff]
        %v549 = vld [vmem:[%s545 + $0x18] sm:$0xff]
        %v550 = vld [vmem:[%s545 + $0x20] sm:$0xff]
        %v551 = vld [vmem:[%s545 + $0x28] sm:$0xff]
        %v552 = vld [vmem:[%s545 + $0x30] sm:$0xff]
        %v553 = vld [vmem:[%s545 + $0x38] sm:$0xff]
        %v554 = vld [vmem:[%s545 + $0x40] sm:$0xff]
        %v555 = vld [vmem:[%s545 + $0x48] sm:$0xff]
        %v556 = vld [vmem:[%s545 + $0x50] sm:$0xff]
        %v557 = vld [vmem:[%s545 + $0x58] sm:$0xff]
        %v558 = vld [vmem:[%s545 + $0x60] sm:$0xff]
        %v559 = vld [vmem:[%s545 + $0x68] sm:$0xff]
        %v560 = vld [vmem:[%s545 + $0x70] sm:$0xff]
        %v561 = vld [vmem:[%s545 + $0x78] sm:$0xff]
        %v562 = vld [vmem:[%s545 + $0x80] sm:$0xff]
        %v563 = vld [vmem:[%s545 + $0x88] sm:$0xff]
        %v564 = vld [vmem:[%s545 + $0x90] sm:$0xff]
        %v565 = vld [vmem:[%s545 + $0x98] sm:$0xff]
        %v566 = vld [vmem:[%s545 + $0xa0] sm:$0xff]
        %v567 = vld [vmem:[%s545 + $0xa8] sm:$0xff]
        %v568 = vld [vmem:[%s545 + $0xb0] sm:$0xff]
        %v569 = vld [vmem:[%s545 + $0xb8] sm:$0xff]
        %v570 = vld [vmem:[%s545 + $0xc0] sm:$0xff]
        %v571 = vld [vmem:[%s545 + $0xc8] sm:$0xff]
        %v572 = vld [vmem:[%s545 + $0xd0] sm:$0xff]
        %v573 = vld [vmem:[%s545 + $0xd8] sm:$0xff]
        %v574 = vld [vmem:[%s545 + $0xe0] sm:$0xff]
        %v575 = vld [vmem:[%s545 + $0xe8] sm:$0xff]
        %v576 = vld [vmem:[%s545 + $0xf0] sm:$0xff]
        %v577 = vld [vmem:[%s545 + $0xf8] sm:$0xff]
        %578 = vmatprep.subr.mxu0 %v547
        %579 = vmatpush1.msra.mxu0 %v546
        %580 = vmatprep.subr.mxu0 %v549
        %581 = vmatpush1.msra.mxu0 %v548
        %582 = vmatprep.subr.mxu0 %v551
        %583 = vmatpush1.msra.mxu0 %v550
        %584 = vmatprep.subr.mxu0 %v553
        %585 = vmatpush1.msra.mxu0 %v552
        %586 = vmatprep.subr.mxu0 %v555
        %587 = vmatpush1.msra.mxu0 %v554
        %588 = vmatprep.subr.mxu0 %v557
        %589 = vmatpush1.msra.mxu0 %v556
        %590 = vmatprep.subr.mxu0 %v559
        %591 = vmatpush1.msra.mxu0 %v558
        %592 = vmatprep.subr.mxu0 %v561
        %593 = vmatpush1.msra.mxu0 %v560
        %594 = vmatprep.subr.mxu0 %v563
        %595 = vmatpush1.msra.mxu0 %v562
        %596 = vmatprep.subr.mxu0 %v565
        %597 = vmatpush1.msra.mxu0 %v564
        %598 = vmatprep.subr.mxu0 %v567
        %599 = vmatpush1.msra.mxu0 %v566
        %600 = vmatprep.subr.mxu0 %v569
        %601 = vmatpush1.msra.mxu0 %v568
        %602 = vmatprep.subr.mxu0 %v571
        %603 = vmatpush1.msra.mxu0 %v570
        %604 = vmatprep.subr.mxu0 %v573
        %605 = vmatpush1.msra.mxu0 %v572
        %606 = vmatprep.subr.mxu0 %v575
        %607 = vmatpush1.msra.mxu0 %v574
        %608 = vmatprep.subr.mxu0 %v577
        %609 = vmatpush1.msra.mxu0 %v576
        %610 = vmatprep.subr.mxu0 0.0
        %611 = vmatpush1.msra.mxu0 0.0
        %612 = vmatprep.subr.mxu0 0.0
        %613 = vmatpush1.msra.mxu0 0.0
        %614 = vmatprep.subr.mxu0 0.0
        %615 = vmatpush1.msra.mxu0 0.0
        %616 = vmatprep.subr.mxu0 0.0
        %617 = vmatpush1.msra.mxu0 0.0
        %618 = vmatprep.subr.mxu0 0.0
        %619 = vmatpush1.msra.mxu0 0.0
        %620 = vmatprep.subr.mxu0 0.0
        %621 = vmatpush1.msra.mxu0 0.0
        %622 = vmatprep.subr.mxu0 0.0
        %623 = vmatpush1.msra.mxu0 0.0
        %624 = vmatprep.subr.mxu0 0.0
        %625 = vmatpush1.msra.mxu0 0.0
        %626 = vmatprep.subr.mxu0 0.0
        %627 = vmatpush1.msra.mxu0 0.0
        %628 = vmatprep.subr.mxu0 0.0
        %629 = vmatpush1.msra.mxu0 0.0
        %630 = vmatprep.subr.mxu0 0.0
        %631 = vmatpush1.msra.mxu0 0.0
        %632 = vmatprep.subr.mxu0 0.0
        %633 = vmatpush1.msra.mxu0 0.0
        %634 = vmatprep.subr.mxu0 0.0
        %635 = vmatpush1.msra.mxu0 0.0
        %636 = vmatprep.subr.mxu0 0.0
        %637 = vmatpush1.msra.mxu0 0.0
        %638 = vmatprep.subr.mxu0 0.0
        %639 = vmatpush1.msra.mxu0 0.0
        %640 = vmatprep.subr.mxu0 0.0
        %641 = vmatpush1.msra.mxu0 0.0
        %642 = vmatprep.mubr.f32.mxu0 0.0
        %643 = vmatmul.mubr.f32.gmra.mrb[0].mxu0 %v324
        %v644 = vpop.f32.mrb[0].mxu0
        %v645 = vadd.f32 0.0, %v644
        %v646 = vpop.f32.mrb[0].mxu0
        %v647 = vadd.f32 0.0, %v646
        %648 = vmatprep.mubr.f32.mxu0 0.0
        %649 = vmatmul.mubr.f32.gmra.mrb[0].mxu0 %v325
        %v650 = vpop.f32.mrb[0].mxu0
        %v651 = vadd.f32 0.0, %v650
        %v652 = vpop.f32.mrb[0].mxu0
        %v653 = vadd.f32 0.0, %v652
        %654 = vdwg.mxu0
        %v655 = vadd.f32 %v535, %v645
        %v656 = vadd.f32 %v537, %v647
        %v657 = vadd.f32 %v541, %v651
        %v658 = vadd.f32 %v543, %v653
        %v659 = vld [vmem:[%s221] sm:$0x1]
        %v660 = vxor.u32 %v659, 2147483648
        %v661 = vmul.f32 %v660, 1.442695
        %v662 = vpow.pop %v661
        %v663 = vadd.f32 %v662, 1.0
        %v664 = vrcp.pop %v663
        %v665 = vmul.f32 1.0, %v664
        %v666 = vmul.f32 %v659, %v665
        %vm667 = vcmask 261120
        %v669 = vsel %vm667, %v666, 0
        %671 = vmatprep.subr.mxu0 0.0
        %672 = vmatpush1.msra.mxu0 %v235
        %673 = vmatprep.subr.mxu0 0.0
        %674 = vmatpush1.msra.mxu0 %v236
        %675 = vmatprep.subr.mxu0 0.0
        %676 = vmatpush1.msra.mxu0 %v237
        %677 = vmatprep.subr.mxu0 0.0
        %678 = vmatpush1.msra.mxu0 %v238
        %679 = vmatprep.subr.mxu0 0.0
        %680 = vmatpush1.msra.mxu0 0.0
        %681 = vmatprep.subr.mxu0 0.0
        %682 = vmatpush1.msra.mxu0 0.0
        %683 = vmatprep.subr.mxu0 0.0
        %684 = vmatpush1.msra.mxu0 0.0
        %685 = vmatprep.subr.mxu0 0.0
        %686 = vmatpush1.msra.mxu0 0.0
        %687 = vmatprep.subr.mxu0 0.0
        %688 = vmatpush1.msra.mxu0 0.0
        %689 = vmatprep.subr.mxu0 0.0
        %690 = vmatpush1.msra.mxu0 0.0
        %691 = vmatprep.subr.mxu0 0.0
        %692 = vmatpush1.msra.mxu0 0.0
        %693 = vmatprep.subr.mxu0 0.0
        %694 = vmatpush1.msra.mxu0 0.0
        %695 = vmatprep.subr.mxu0 0.0
        %696 = vmatpush1.msra.mxu0 0.0
        %697 = vmatprep.subr.mxu0 0.0
        %698 = vmatpush1.msra.mxu0 0.0
        %699 = vmatprep.subr.mxu0 0.0
        %700 = vmatpush1.msra.mxu0 0.0
        %701 = vmatprep.subr.mxu0 0.0
        %702 = vmatpush1.msra.mxu0 0.0
        %703 = vmatprep.subr.mxu0 0.0
        %704 = vmatpush1.msra.mxu0 0.0
        %705 = vmatprep.subr.mxu0 0.0
        %706 = vmatpush1.msra.mxu0 0.0
        %707 = vmatprep.subr.mxu0 0.0
        %708 = vmatpush1.msra.mxu0 0.0
        %709 = vmatprep.subr.mxu0 0.0
        %710 = vmatpush1.msra.mxu0 0.0
        %711 = vmatprep.subr.mxu0 0.0
        %712 = vmatpush1.msra.mxu0 0.0
        %713 = vmatprep.subr.mxu0 0.0
        %714 = vmatpush1.msra.mxu0 0.0
        %715 = vmatprep.subr.mxu0 0.0
        %716 = vmatpush1.msra.mxu0 0.0
        %717 = vmatprep.subr.mxu0 0.0
        %718 = vmatpush1.msra.mxu0 0.0
        %719 = vmatprep.subr.mxu0 0.0
        %720 = vmatpush1.msra.mxu0 0.0
        %721 = vmatprep.subr.mxu0 0.0
        %722 = vmatpush1.msra.mxu0 0.0
        %723 = vmatprep.subr.mxu0 0.0
        %724 = vmatpush1.msra.mxu0 0.0
        %725 = vmatprep.subr.mxu0 0.0
        %726 = vmatpush1.msra.mxu0 0.0
        %727 = vmatprep.subr.mxu0 0.0
        %728 = vmatpush1.msra.mxu0 0.0
        %729 = vmatprep.subr.mxu0 0.0
        %730 = vmatpush1.msra.mxu0 0.0
        %731 = vmatprep.subr.mxu0 0.0
        %732 = vmatpush1.msra.mxu0 0.0
        %733 = vmatprep.subr.mxu0 0.0
        %734 = vmatpush1.msra.mxu0 0.0
        %735 = vmatprep.mubr.f32.mxu0 0.0
        %736 = vmatmul.mubr.f32.gmra.mrb[0].mxu0 %v669
        %v737 = vpop.f32.mrb[0].mxu0
        %v738 = vadd.f32 %v231, %v737
        %v739 = vpop.f32.mrb[0].mxu0
        %740 = vdwg.mxu0
        %v741 = vlaneseq
        %v742 = vshrl.u32 %v741, 7
        %v743 = vsub.s32 0, %v742
        %v744 = vrot.slane %v738, %v743
        %v745 = vadd.f32 %v655, %v744
        %v746 = vadd.f32 %v657, %v744
        %747 = vadd.xlane.f32.xlu0 %v745
        %v748 = vpop.xlane.xlu0 %747
        %749 = vadd.xlane.f32.xlu0 %v746
        %v750 = vpop.xlane.xlu0 %749
        %v751 = vadd.f32 %v748, %v750
        %v752 = vrot.slane %v751, 4
        %v753 = vadd.f32 %v751, %v752
        %v754 = vrot.slane %v753, 2
        %v755 = vadd.f32 %v753, %v754
        %v756 = vrot.slane %v755, 1
        %v757 = vadd.f32 %v755, %v756
        %v758 = vmul.f32 %v745, %v745
        %v759 = vmul.f32 %v746, %v746
        %760 = vadd.xlane.f32.xlu0 %v758
        %v761 = vpop.xlane.xlu0 %760
        %762 = vadd.xlane.f32.xlu0 %v759
        %v763 = vpop.xlane.xlu0 %762
        %v764 = vadd.f32 %v761, %v763
        %v765 = vrot.slane %v764, 4
        %v766 = vadd.f32 %v764, %v765
        %v767 = vrot.slane %v766, 2
        %v768 = vadd.f32 %v766, %v767
        %v769 = vrot.slane %v768, 1
        %v770 = vadd.f32 %v768, %v769
        %v771 = vmul.f32 %v757, 0.00048828125
        %v772 = vmul.f32 %v770, 0.00048828125
        %v773 = vmul.f32 %v771, %v771
        %v774 = vsub.f32 %v772, %v773
        %v775 = vmax.f32 %v774, 0.0
        %v776 = vsub.f32 %v745, %v771
        %v777 = vsub.f32 %v746, %v771
        %v778 = vadd.f32 %v775, 1e-06
        %v779 = vrsqrt.pop %v778
        %v780 = vmul.f32 %v776, %v779
        %v781 = vmul.f32 %v777, %v779
        %v782 = vlaneseq
        %v783 = vshrl.u32 %v782, 7
        %v784 = vsub.s32 0, %v783
        %v785 = vrot.slane %v232, %v784
        %v786 = vmul.f32 %v780, %v785
        %v787 = vmul.f32 %v781, %v785
        %v788 = vlaneseq
        %v789 = vshrl.u32 %v788, 7
        %v790 = vsub.s32 0, %v789
        %v791 = vrot.slane %v233, %v790
        %v792 = vadd.f32 %v786, %v791
        %v793 = vadd.f32 %v787, %v791
        %v794 = vxor.u32 %v792, 2147483648
        %v795 = vxor.u32 %v793, 2147483648
        %v796 = vmul.f32 %v794, 1.442695
        %v797 = vpow.pop %v796
        %v798 = vmul.f32 %v795, 1.442695
        %v799 = vpow.pop %v798
        %v800 = vadd.f32 %v797, 1.0
        %v801 = vadd.f32 %v799, 1.0
        %v802 = vrcp.pop %v800
        %v803 = vmul.f32 1.0, %v802
        %v804 = vrcp.pop %v801
        %v805 = vmul.f32 1.0, %v804
        %v806 = vmul.f32 %v792, %v803
        %v807 = vmul.f32 %v793, %v805
        %v808 = vrot.slane %v806, 7
        %v809 = vrot.slane %v807, 7
        %v810 = vsel %vm312, %v808, %v809
        %v811 = vsel %vm312, %v809, %v808
        %v812 = vsel %vm308, 0.0, %v811
        %v813 = vsel %vm309, 0.0, %v810
        %v814 = vrot.slane %v806, 1
        %v815 = vrot.slane %v807, 1
        %v816 = vsel %vm321, %v814, %v815
        %v817 = vsel %vm321, %v815, %v814
        %v818 = vsel %vm317, 0.0, %v816
        %v819 = vsel %vm318, 0.0, %v817
        %v820 = vld [vmem:[#allocation2 + $0x100] sm:$0xff]
        %v821 = vld [vmem:[#allocation2 + $0x110] sm:$0xff]
        %v822 = vld [vmem:[#allocation2 + $0x120] sm:$0xff]
        %v823 = vld [vmem:[#allocation2 + $0x130] sm:$0xff]
        %v824 = vld [vmem:[#allocation2 + $0x140] sm:$0xff]
        %v825 = vld [vmem:[#allocation2 + $0x150] sm:$0xff]
        %v826 = vld [vmem:[#allocation2 + $0x160] sm:$0xff]
        %v827 = vld [vmem:[#allocation2 + $0x170] sm:$0xff]
        %v828 = vld [vmem:[#allocation2 + $0x180] sm:$0xff]
        %v829 = vld [vmem:[#allocation2 + $0x190] sm:$0xff]
        %v830 = vld [vmem:[#allocation2 + $0x1a0] sm:$0xff]
        %v831 = vld [vmem:[#allocation2 + $0x1b0] sm:$0xff]
        %v832 = vld [vmem:[#allocation2 + $0x1c0] sm:$0xff]
        %v833 = vld [vmem:[#allocation2 + $0x1d0] sm:$0xff]
        %v834 = vld [vmem:[#allocation2 + $0x1e0] sm:$0xff]
        %v835 = vld [vmem:[#allocation2 + $0x1f0] sm:$0xff]
        %v836 = vld [vmem:[%s358 + $0x100] sm:$0xff]
        %v837 = vld [vmem:[%s358 + $0x110] sm:$0xff]
        %v838 = vld [vmem:[%s358 + $0x120] sm:$0xff]
        %v839 = vld [vmem:[%s358 + $0x130] sm:$0xff]
        %v840 = vld [vmem:[%s358 + $0x140] sm:$0xff]
        %v841 = vld [vmem:[%s358 + $0x150] sm:$0xff]
        %v842 = vld [vmem:[%s358 + $0x160] sm:$0xff]
        %v843 = vld [vmem:[%s358 + $0x170] sm:$0xff]
        %v844 = vld [vmem:[%s358 + $0x180] sm:$0xff]
        %v845 = vld [vmem:[%s358 + $0x190] sm:$0xff]
        %v846 = vld [vmem:[%s358 + $0x1a0] sm:$0xff]
        %v847 = vld [vmem:[%s358 + $0x1b0] sm:$0xff]
        %v848 = vld [vmem:[%s358 + $0x1c0] sm:$0xff]
        %v849 = vld [vmem:[%s358 + $0x1d0] sm:$0xff]
        %v850 = vld [vmem:[%s358 + $0x1e0] sm:$0xff]
        %v851 = vld [vmem:[%s358 + $0x1f0] sm:$0xff]
        %852 = vmatprep.subr.mxu0 0.0
        %853 = vmatpush1.msra.mxu0 %v836
        %854 = vmatprep.subr.mxu0 0.0
        %855 = vmatpush1.msra.mxu0 %v837
        %856 = vmatprep.subr.mxu0 0.0
        %857 = vmatpush1.msra.mxu0 %v838
        %858 = vmatprep.subr.mxu0 0.0
        %859 = vmatpush1.msra.mxu0 %v839
        %860 = vmatprep.subr.mxu0 0.0
        %861 = vmatpush1.msra.mxu0 %v840
        %862 = vmatprep.subr.mxu0 0.0
        %863 = vmatpush1.msra.mxu0 %v841
        %864 = vmatprep.subr.mxu0 0.0
        %865 = vmatpush1.msra.mxu0 %v842
        %866 = vmatprep.subr.mxu0 0.0
        %867 = vmatpush1.msra.mxu0 %v843
        %868 = vmatprep.subr.mxu0 0.0
        %869 = vmatpush1.msra.mxu0 %v844
        %870 = vmatprep.subr.mxu0 0.0
        %871 = vmatpush1.msra.mxu0 %v845
        %872 = vmatprep.subr.mxu0 0.0
        %873 = vmatpush1.msra.mxu0 %v846
        %874 = vmatprep.subr.mxu0 0.0
        %875 = vmatpush1.msra.mxu0 %v847
        %876 = vmatprep.subr.mxu0 0.0
        %877 = vmatpush1.msra.mxu0 %v848
        %878 = vmatprep.subr.mxu0 0.0
        %879 = vmatpush1.msra.mxu0 %v849
        %880 = vmatprep.subr.mxu0 0.0
        %881 = vmatpush1.msra.mxu0 %v850
        %882 = vmatprep.subr.mxu0 0.0
        %883 = vmatpush1.msra.mxu0 %v851
        %884 = vmatprep.subr.mxu0 0.0
        %885 = vmatpush1.msra.mxu0 0.0
        %886 = vmatprep.subr.mxu0 0.0
        %887 = vmatpush1.msra.mxu0 0.0
        %888 = vmatprep.subr.mxu0 0.0
        %889 = vmatpush1.msra.mxu0 0.0
        %890 = vmatprep.subr.mxu0 0.0
        %891 = vmatpush1.msra.mxu0 0.0
        %892 = vmatprep.subr.mxu0 0.0
        %893 = vmatpush1.msra.mxu0 0.0
        %894 = vmatprep.subr.mxu0 0.0
        %895 = vmatpush1.msra.mxu0 0.0
        %896 = vmatprep.subr.mxu0 0.0
        %897 = vmatpush1.msra.mxu0 0.0
        %898 = vmatprep.subr.mxu0 0.0
        %899 = vmatpush1.msra.mxu0 0.0
        %900 = vmatprep.subr.mxu0 0.0
        %901 = vmatpush1.msra.mxu0 0.0
        %902 = vmatprep.subr.mxu0 0.0
        %903 = vmatpush1.msra.mxu0 0.0
        %904 = vmatprep.subr.mxu0 0.0
        %905 = vmatpush1.msra.mxu0 0.0
        %906 = vmatprep.subr.mxu0 0.0
        %907 = vmatpush1.msra.mxu0 0.0
        %908 = vmatprep.subr.mxu0 0.0
        %909 = vmatpush1.msra.mxu0 0.0
        %910 = vmatprep.subr.mxu0 0.0
        %911 = vmatpush1.msra.mxu0 0.0
        %912 = vmatprep.subr.mxu0 0.0
        %913 = vmatpush1.msra.mxu0 0.0
        %914 = vmatprep.subr.mxu0 0.0
        %915 = vmatpush1.msra.mxu0 0.0
        %916 = vmatprep.mubr.f32.mxu0 0.0
        %917 = vmatmul.mubr.f32.gmra.mrb[0].mxu0 %v806
        %v918 = vpop.f32.mrb[0].mxu0
        %v919 = vadd.f32 0.0, %v918
        %v920 = vpop.f32.mrb[0].mxu0
        %921 = vmatprep.mubr.f32.mxu0 0.0
        %922 = vmatmul.mubr.f32.gmra.mrb[0].mxu0 %v807
        %v923 = vpop.f32.mrb[0].mxu0
        %v924 = vadd.f32 0.0, %v923
        %v925 = vpop.f32.mrb[0].mxu0
        %926 = vdwg.mxu0
        %927 = vmatprep.subr.mxu0 0.0
        %928 = vmatpush1.msra.mxu0 %v820
        %929 = vmatprep.subr.mxu0 0.0
        %930 = vmatpush1.msra.mxu0 %v821
        %931 = vmatprep.subr.mxu0 0.0
        %932 = vmatpush1.msra.mxu0 %v822
        %933 = vmatprep.subr.mxu0 0.0
        %934 = vmatpush1.msra.mxu0 %v823
        %935 = vmatprep.subr.mxu0 0.0
        %936 = vmatpush1.msra.mxu0 %v824
        %937 = vmatprep.subr.mxu0 0.0
        %938 = vmatpush1.msra.mxu0 %v825
        %939 = vmatprep.subr.mxu0 0.0
        %940 = vmatpush1.msra.mxu0 %v826
        %941 = vmatprep.subr.mxu0 0.0
        %942 = vmatpush1.msra.mxu0 %v827
        %943 = vmatprep.subr.mxu0 0.0
        %944 = vmatpush1.msra.mxu0 %v828
        %945 = vmatprep.subr.mxu0 0.0
        %946 = vmatpush1.msra.mxu0 %v829
        %947 = vmatprep.subr.mxu0 0.0
        %948 = vmatpush1.msra.mxu0 %v830
        %949 = vmatprep.subr.mxu0 0.0
        %950 = vmatpush1.msra.mxu0 %v831
        %951 = vmatprep.subr.mxu0 0.0
        %952 = vmatpush1.msra.mxu0 %v832
        %953 = vmatprep.subr.mxu0 0.0
        %954 = vmatpush1.msra.mxu0 %v833
        %955 = vmatprep.subr.mxu0 0.0
        %956 = vmatpush1.msra.mxu0 %v834
        %957 = vmatprep.subr.mxu0 0.0
        %958 = vmatpush1.msra.mxu0 %v835
        %959 = vmatprep.subr.mxu0 0.0
        %960 = vmatpush1.msra.mxu0 0.0
        %961 = vmatprep.subr.mxu0 0.0
        %962 = vmatpush1.msra.mxu0 0.0
        %963 = vmatprep.subr.mxu0 0.0
        %964 = vmatpush1.msra.mxu0 0.0
        %965 = vmatprep.subr.mxu0 0.0
        %966 = vmatpush1.msra.mxu0 0.0
        %967 = vmatprep.subr.mxu0 0.0
        %968 = vmatpush1.msra.mxu0 0.0
        %969 = vmatprep.subr.mxu0 0.0
        %970 = vmatpush1.msra.mxu0 0.0
        %971 = vmatprep.subr.mxu0 0.0
        %972 = vmatpush1.msra.mxu0 0.0
        %973 = vmatprep.subr.mxu0 0.0
        %974 = vmatpush1.msra.mxu0 0.0
        %975 = vmatprep.subr.mxu0 0.0
        %976 = vmatpush1.msra.mxu0 0.0
        %977 = vmatprep.subr.mxu0 0.0
        %978 = vmatpush1.msra.mxu0 0.0
        %979 = vmatprep.subr.mxu0 0.0
        %980 = vmatpush1.msra.mxu0 0.0
        %981 = vmatprep.subr.mxu0 0.0
        %982 = vmatpush1.msra.mxu0 0.0
        %983 = vmatprep.subr.mxu0 0.0
        %984 = vmatpush1.msra.mxu0 0.0
        %985 = vmatprep.subr.mxu0 0.0
        %986 = vmatpush1.msra.mxu0 0.0
        %987 = vmatprep.subr.mxu0 0.0
        %988 = vmatpush1.msra.mxu0 0.0
        %989 = vmatprep.subr.mxu0 0.0
        %990 = vmatpush1.msra.mxu0 0.0
        %991 = vmatprep.mubr.f32.mxu0 0.0
        %992 = vmatmul.mubr.f32.gmra.mrb[0].mxu0 %v812
        %v993 = vpop.f32.mrb[0].mxu0
        %v994 = vadd.f32 %v919, %v993
        %v995 = vpop.f32.mrb[0].mxu0
        %996 = vmatprep.mubr.f32.mxu0 0.0
        %997 = vmatmul.mubr.f32.gmra.mrb[0].mxu0 %v813
        %v998 = vpop.f32.mrb[0].mxu0
        %v999 = vadd.f32 %v924, %v998
        %v1000 = vpop.f32.mrb[0].mxu0
        %1001 = vdwg.mxu0
        %v1002 = vld [vmem:[%s545 + $0x100] sm:$0xff]
        %v1003 = vld [vmem:[%s545 + $0x110] sm:$0xff]
        %v1004 = vld [vmem:[%s545 + $0x120] sm:$0xff]
        %v1005 = vld [vmem:[%s545 + $0x130] sm:$0xff]
        %v1006 = vld [vmem:[%s545 + $0x140] sm:$0xff]
        %v1007 = vld [vmem:[%s545 + $0x150] sm:$0xff]
        %v1008 = vld [vmem:[%s545 + $0x160] sm:$0xff]
        %v1009 = vld [vmem:[%s545 + $0x170] sm:$0xff]
        %v1010 = vld [vmem:[%s545 + $0x180] sm:$0xff]
        %v1011 = vld [vmem:[%s545 + $0x190] sm:$0xff]
        %v1012 = vld [vmem:[%s545 + $0x1a0] sm:$0xff]
        %v1013 = vld [vmem:[%s545 + $0x1b0] sm:$0xff]
        %v1014 = vld [vmem:[%s545 + $0x1c0] sm:$0xff]
        %v1015 = vld [vmem:[%s545 + $0x1d0] sm:$0xff]
        %v1016 = vld [vmem:[%s545 + $0x1e0] sm:$0xff]
        %v1017 = vld [vmem:[%s545 + $0x1f0] sm:$0xff]
        %1018 = vmatprep.subr.mxu0 0.0
        %1019 = vmatpush1.msra.mxu0 %v1002
        %1020 = vmatprep.subr.mxu0 0.0
        %1021 = vmatpush1.msra.mxu0 %v1003
        %1022 = vmatprep.subr.mxu0 0.0
        %1023 = vmatpush1.msra.mxu0 %v1004
        %1024 = vmatprep.subr.mxu0 0.0
        %1025 = vmatpush1.msra.mxu0 %v1005
        %1026 = vmatprep.subr.mxu0 0.0
        %1027 = vmatpush1.msra.mxu0 %v1006
        %1028 = vmatprep.subr.mxu0 0.0
        %1029 = vmatpush1.msra.mxu0 %v1007
        %1030 = vmatprep.subr.mxu0 0.0
        %1031 = vmatpush1.msra.mxu0 %v1008
        %1032 = vmatprep.subr.mxu0 0.0
        %1033 = vmatpush1.msra.mxu0 %v1009
        %1034 = vmatprep.subr.mxu0 0.0
        %1035 = vmatpush1.msra.mxu0 %v1010
        %1036 = vmatprep.subr.mxu0 0.0
        %1037 = vmatpush1.msra.mxu0 %v1011
        %1038 = vmatprep.subr.mxu0 0.0
        %1039 = vmatpush1.msra.mxu0 %v1012
        %1040 = vmatprep.subr.mxu0 0.0
        %1041 = vmatpush1.msra.mxu0 %v1013
        %1042 = vmatprep.subr.mxu0 0.0
        %1043 = vmatpush1.msra.mxu0 %v1014
        %1044 = vmatprep.subr.mxu0 0.0
        %1045 = vmatpush1.msra.mxu0 %v1015
        %1046 = vmatprep.subr.mxu0 0.0
        %1047 = vmatpush1.msra.mxu0 %v1016
        %1048 = vmatprep.subr.mxu0 0.0
        %1049 = vmatpush1.msra.mxu0 %v1017
        %1050 = vmatprep.subr.mxu0 0.0
        %1051 = vmatpush1.msra.mxu0 0.0
        %1052 = vmatprep.subr.mxu0 0.0
        %1053 = vmatpush1.msra.mxu0 0.0
        %1054 = vmatprep.subr.mxu0 0.0
        %1055 = vmatpush1.msra.mxu0 0.0
        %1056 = vmatprep.subr.mxu0 0.0
        %1057 = vmatpush1.msra.mxu0 0.0
        %1058 = vmatprep.subr.mxu0 0.0
        %1059 = vmatpush1.msra.mxu0 0.0
        %1060 = vmatprep.subr.mxu0 0.0
        %1061 = vmatpush1.msra.mxu0 0.0
        %1062 = vmatprep.subr.mxu0 0.0
        %1063 = vmatpush1.msra.mxu0 0.0
        %1064 = vmatprep.subr.mxu0 0.0
        %1065 = vmatpush1.msra.mxu0 0.0
        %1066 = vmatprep.subr.mxu0 0.0
        %1067 = vmatpush1.msra.mxu0 0.0
        %1068 = vmatprep.subr.mxu0 0.0
        %1069 = vmatpush1.msra.mxu0 0.0
        %1070 = vmatprep.subr.mxu0 0.0
        %1071 = vmatpush1.msra.mxu0 0.0
        %1072 = vmatprep.subr.mxu0 0.0
        %1073 = vmatpush1.msra.mxu0 0.0
        %1074 = vmatprep.subr.mxu0 0.0
        %1075 = vmatpush1.msra.mxu0 0.0
        %1076 = vmatprep.subr.mxu0 0.0
        %1077 = vmatpush1.msra.mxu0 0.0
        %1078 = vmatprep.subr.mxu0 0.0
        %1079 = vmatpush1.msra.mxu0 0.0
        %1080 = vmatprep.subr.mxu0 0.0
        %1081 = vmatpush1.msra.mxu0 0.0
        %1082 = vmatprep.mubr.f32.mxu0 0.0
        %1083 = vmatmul.mubr.f32.gmra.mrb[0].mxu0 %v818
        %v1084 = vpop.f32.mrb[0].mxu0
        %v1085 = vadd.f32 0.0, %v1084
        %v1086 = vpop.f32.mrb[0].mxu0
        %1087 = vmatprep.mubr.f32.mxu0 0.0
        %1088 = vmatmul.mubr.f32.gmra.mrb[0].mxu0 %v819
        %v1089 = vpop.f32.mrb[0].mxu0
        %v1090 = vadd.f32 0.0, %v1089
        %v1091 = vpop.f32.mrb[0].mxu0
        %1092 = vdwg.mxu0
        %v1093 = vadd.f32 %v994, %v1085
        %v1094 = vadd.f32 %v999, %v1090
        %v1095 = vadd.f32 %v1093, %v656
        %v1096 = vadd.f32 %v1094, %v658
        %v1097 = vlaneseq
        %v1098 = vshrl.u32 %v1097, 7
        %v1099 = vsub.s32 0, %v1098
        %v1100 = vrot.slane %v234, %v1099
        %v1101 = vadd.f32 %v1095, %v1100
        %v1102 = vadd.f32 %v1096, %v1100
        %v1103 = vmul.f32 %v1101, 0.70710677
        %v1104 = vmul.f32 %v1102, 0.70710677
        %1105 = vst [vmem:[%s226] sm:$0xff] %v1103
        %1106 = vst [vmem:[%s226 + $0x8] sm:$0xff] %v1104
        %p1107 = scmp.lt.s32.totalorder %s16, 1
        %s1108 = scalar_select %p1107, %s16, 1
        %s1109 = smul.addr %s1108, 2
        %s1110 = smul.addr %s1109, 8
        %s1111 = scalar_lea.vmem %s4, %s1110
        // Predicated region
        $region41: #{resnet_block_biggan.1} parent=35 // pred_check
          %p1112 = pneg %p128
        $region42: #{resnet_block_biggan.1} parent=35 // pred_check_branch
          %1114 = sbr.rel (%p1112) target = $region44
        $region43: #{resnet_block_biggan.1} parent=35 // pred_region
          _
        $region44: #{resnet_block_biggan.1} parent=35 // pred_fallthru
          _
      $region36: #{resnet_block_biggan.1} parent=5 // pred_fallthru
        _
      %p1115 = scmp.le.s32.totalorder 2, %s11
      // Predicated region
      $region45: #{resnet_block_biggan.1} parent=5 // pred_check
        %p1116 = pneg %p1115
      $region46: #{resnet_block_biggan.1} parent=5 // pred_check_branch
        %1118 = sbr.rel (%p1116) target = $region48
      $region47: #{resnet_block_biggan.1} parent=5 // pred_region
        %s1119 = ssub.s32 %s11, 2
        // Predicated region
        $region49: #{resnet_block_biggan.1} parent=47 // pred_check
          %p1120 = pneg %p134
        $region50: #{resnet_block_biggan.1} parent=47 // pred_check_branch
          %1122 = sbr.rel (%p1120) target = $region52
        $region51: #{resnet_block_biggan.1} parent=47 // pred_region
          %p1123 = scmp.lt.s32.totalorder %s17, 1
          %s1124 = scalar_select %p1123, %s17, 1
          %s1125 = smul.addr %s1124, 2
          %s1126 = smul.addr %s1125, 8
          %s1127 = scalar_lea.vmem %s4, %s1126
        $region52: #{resnet_block_biggan.1} parent=47 // pred_fallthru
          _
      $region48: #{resnet_block_biggan.1} parent=5 // pred_fallthru
        _
    $region6: #{resnet_block_biggan.1} parent=1 // loop_footer
      %s15 = sadd.s32 1, %s11
    $region7: #{resnet_block_biggan.1} parent=1 // loop_footer_branch
      %10 = sbr.rel target = $region3
    $region8: #{resnet_block_biggan.1} parent=1 // loop_exit
      _
    %1128 = vsyncpa [#allocation3], 1
    %s1129 = scalar_lea.sflag [#allocation3], 1
    %1130 = vsyncpa %s1129, 1

</llo_original>
